<compile_context>
chip_gen: v6e
topology: v6e:2x2x1
jax: 0.10.0
libtpu: 0.0.40
codegen_flags: <defaults>
</compile_context>

<pallas_src>
import math
import functools

import jax
import jax.numpy as jnp
from jax.experimental import pallas as pl
from jax.experimental.pallas import tpu as pltpu


def _round_up(n, m):
    return ((n + m - 1) // m) * m


def make_kernel(num_layers, num_heads, vocab_rows):
    """Builds the Pallas kernel closure over the static hyper-parameters."""

    def _layernorm(y, w, b, eps=1e-5):
        mu = jnp.mean(y, axis=-1, keepdims=True)
        var = jnp.mean((y - mu) ** 2, axis=-1, keepdims=True)
        return (y - mu) * jax.lax.rsqrt(var + eps) * w + b

    def kernel(tok_ref, emb_pe_ref, bias_ref,
               in_w_ref, out_w_ref, ff1_w_ref, ff2_w_ref, dec_w_ref, o_ref):
        S, B, Vp = o_ref.shape
        Vr = vocab_rows                      # sublane-padded vocab rows of the embed table
        E = emb_pe_ref.shape[1]
        Fp = ff1_w_ref.shape[2]              # lane-padded FFN hidden dim
        H = num_heads
        Dh = E // H
        BS = B * S
        bf16 = jnp.bfloat16
        q_scale = 1.0 / math.sqrt(Dh)        # PyTorch MHA scales q by head_dim ** -0.5

        # ---- embedding gather (one-hot @ table on MXU, exact f32), *sqrt(E), +PE -----
        # TODO(synk): replace the one-hot matmul with a scalar-prefetched DMA row gather
        # (PrefetchScalarGridSpec) once the vocabulary grows beyond a few hundred.
        tok = tok_ref[...]                                               # (B*S, 1) int32
        vocab_iota = jax.lax.broadcasted_iota(jnp.int32, (BS, Vr), 1)
        one_hot = (tok == vocab_iota).astype(jnp.float32)                # (B*S, Vr)
        x = jnp.dot(one_hot, emb_pe_ref[0:Vr, :],
                    preferred_element_type=jnp.float32) * math.sqrt(E)   # (B*S, E)
        x = x.reshape(B, S, E) + emb_pe_ref[Vr:Vr + S, :][None, :, :]
        x2 = x.reshape(BS, E)                                            # batch-major rows

        # ---- causal additive mask (generate_square_subsequent_mask), f32 only --------
        rows_i = jax.lax.broadcasted_iota(jnp.int32, (S, S), 0)
        cols_i = jax.lax.broadcasted_iota(jnp.int32, (S, S), 1)
        mask3 = jnp.where(cols_i <= rows_i, 0.0, -1e30).astype(jnp.float32)
        mask3 = mask3.reshape(1, S, S)       # hoisted broadcast, reused by every head

        # TODO(synk): for real L/E/F, move this unrolled loop onto an "arbitrary" grid
        # axis with (L, ...) BlockSpecs so layer weights stream double-buffered instead
        # of being fully VMEM-resident (needed earliest on v7x's 64 MiB VMEM).
        for l in range(num_layers):
            blr = bias_ref[l]                                  # (8, 128) bias/LN slab row
            w_in = in_w_ref[l].astype(bf16)                    # (E, 3E)
            w_out = out_w_ref[l].astype(bf16)                  # (E, E)

            # ---- self attention (per-head, no concatenates / head transposes) --------
            qkv = jnp.dot(x2.astype(bf16), w_in, preferred_element_type=jnp.float32)
            qkv = qkv + blr[0:1, 0:3 * E]                      # (B*S, 3E) f32
            q3 = (qkv[:, 0:E] * q_scale).reshape(B, S, E).astype(bf16)
            k3 = qkv[:, E:2 * E].reshape(B, S, E).astype(bf16)
            v3 = qkv[:, 2 * E:3 * E].reshape(B, S, E).astype(bf16)

            attn = None
            for h in range(H):
                sl = slice(h * Dh, (h + 1) * Dh)
                sc = jnp.einsum('bqd,bkd->bqk', q3[:, :, sl], k3[:, :, sl],
                                preferred_element_type=jnp.float32)      # (B, S, S) f32
                sc = sc + mask3
                sc = sc - jnp.max(sc, axis=-1, keepdims=True)
                p = jnp.exp(sc)
                denom = jnp.sum(p, axis=-1, keepdims=True)
                p = p * pl.reciprocal(denom, approx=True)                # EUP divide (f32)
                oh = jnp.einsum('bqk,bkd->bqd', p.astype(bf16), v3[:, :, sl],
                                preferred_element_type=jnp.float32)      # (B, S, Dh) f32
                # fold out_proj per head: concat_h(o_h) @ W == sum_h o_h @ W[h*Dh:(h+1)*Dh]
                ho = jnp.dot(oh.reshape(BS, Dh).astype(bf16), w_out[sl, :],
                             preferred_element_type=jnp.float32)         # (B*S, E)
                attn = ho if attn is None else attn + ho
            attn = attn + blr[1:2, 0:E]

            # ---- residual + LayerNorm 1 (post-LN) ------------------------------------
            y = _layernorm(x2 + attn, blr[2:3, 0:E], blr[3:4, 0:E])

            # ---- feed-forward (ReLU), lane-dense padded hidden dim -------------------
            hdn = jnp.dot(y.astype(bf16), ff1_w_ref[l].astype(bf16),
                          preferred_element_type=jnp.float32)            # (B*S, Fp)
            hdn = jnp.maximum(hdn + blr[6:7, 0:Fp], 0.0)
            ffo = jnp.dot(hdn.astype(bf16), ff2_w_ref[l].astype(bf16),
                          preferred_element_type=jnp.float32)
            ffo = ffo + blr[7:8, 0:E]

            # ---- residual + LayerNorm 2 ----------------------------------------------
            x2 = _layernorm(y + ffo, blr[4:5, 0:E], blr[5:6, 0:E])

        # ---- decoder (E -> lane-padded vocab), emitted directly as (S, B, Vp) ---------
        dec_row = bias_ref[num_layers]                                   # (8, 128)
        logits = jnp.dot(x2.astype(bf16), dec_w_ref[...].astype(bf16),
                         preferred_element_type=jnp.float32)
        logits = logits + dec_row[0:1, 0:Vp]                             # (B*S, Vp)
        o3 = logits.reshape(B, S, Vp)
        for s in range(S):                   # batch-major -> seq-major via S unrolled
            o_ref[s] = o3[:, s, :]           # lane-dense 128-wide row stores

    return kernel


def _forward_impl(src, params, *, num_heads, num_layers, vocab_size):
    """src: (S, B) int32 tokens, seq-first like PyTorch.  Returns (S, B, vocab)."""
    S, B = src.shape
    Vp = params["dec_w"].shape[1]
    Vr = _round_up(vocab_size, 8)

    # Tiny layout op (16 int32s): tokens to batch-major rows; fused into the jitted program.
    tok = jnp.transpose(src).reshape(B * S, 1).astype(jnp.int32)

    kernel = make_kernel(num_layers, num_heads, Vr)
    operands = (tok, params["emb_pe"], params["bias"],
                params["in_w"], params["out_w"],
                params["ff1_w"], params["ff2_w"], params["dec_w"])

    vmem_spec = pl.BlockSpec(memory_space=pltpu.MemorySpace.VMEM)
    # TODO(synk): on v7x, enable a batch grid with dimension_semantics=("parallel",) for
    # the two TensorCores only once per-step work exceeds the ~0.35 us grid-step overhead.
    out = pl.pallas_call(
        kernel,
        out_shape=jax.ShapeDtypeStruct((S, B, Vp), jnp.float32),
        in_specs=[vmem_spec] * len(operands),
        out_specs=vmem_spec,
        compiler_params=pltpu.CompilerParams(vmem_limit_bytes=32 * 1024 * 1024),
    )(*operands)

    # Only the lane-padding slice remains in the wrapper (output is already (S, B, Vp)).
    return out[:, :, :vocab_size]


transformer_encoder_forward = jax.jit(
    _forward_impl, static_argnames=("num_heads", "num_layers", "vocab_size"))


def init_params(key, vocab_size, embed_dim, hidden_dim, num_layers, max_len=64):
    """Deterministic synthetic parameters matching the nn.Module's shapes.
    Weight matrices are stored pre-transposed so the kernel computes x @ W.
    The decoder vocab and the FFN hidden dim are zero-padded to 128-lane multiples;
    all per-layer biases/LayerNorm params and the decoder bias live in one slab."""
    E, F, L, V = embed_dim, hidden_dim, num_layers, vocab_size
    Fp = _round_up(F, 128)
    Vp = _round_up(V, 128)
    Vr = _round_up(V, 8)
    W = _round_up(max(3 * E, Fp, Vp), 128)
    keys = jax.random.split(key, 12)

    def nrm(k, shape, scale=0.05):
        return (scale * jax.random.normal(k, shape)).astype(jnp.float32)

    # Sinusoidal positional encoding (same formula as PositionalEncoding).
    pos = jnp.arange(max_len, dtype=jnp.float32)[:, None]
    div = jnp.exp(jnp.arange(0, E, 2, dtype=jnp.float32) * (-math.log(10000.0) / E))
    pe = jnp.zeros((max_len, E), jnp.float32)
    pe = pe.at[:, 0::2].set(jnp.sin(pos * div))
    pe = pe.at[:, 1::2].set(jnp.cos(pos * div))

    # Embedding table (rows padded to a sublane multiple) packed with the PE table.
    emb = jnp.zeros((Vr, E), jnp.float32).at[:V, :].set(nrm(keys[0], (V, E), 1.0))
    emb_pe = jnp.concatenate([emb, pe], axis=0)                     # (Vr + max_len, E)

    in_w = nrm(keys[1], (L, E, 3 * E))                              # (in_proj_weight)^T
    out_w = nrm(keys[2], (L, E, E))                                 # (out_proj.weight)^T
    ff1_w = jnp.zeros((L, E, Fp), jnp.float32).at[:, :, :F].set(nrm(keys[3], (L, E, F)))
    ff2_w = jnp.zeros((L, Fp, E), jnp.float32).at[:, :F, :].set(nrm(keys[4], (L, F, E)))
    dec_w = jnp.zeros((E, Vp), jnp.float32).at[:, :V].set(nrm(keys[5], (E, V)))

    # Per-layer bias / LayerNorm slab: one (8, 128) vreg row per layer, plus decoder bias.
    bias = jnp.zeros((L + 1, 8, W), jnp.float32)
    bias = bias.at[:L, 0, :3 * E].set(nrm(keys[6], (L, 3 * E)))     # in_proj bias
    bias = bias.at[:L, 1, :E].set(nrm(keys[7], (L, E)))             # out_proj bias
    bias = bias.at[:L, 2, :E].set(1.0)                              # ln1 weight
    bias = bias.at[:L, 4, :E].set(1.0)                              # ln2 weight (rows 3/5 = LN biases = 0)
    bias = bias.at[:L, 6, :F].set(nrm(keys[8], (L, F)))             # ff1 bias (pad stays 0)
    bias = bias.at[:L, 7, :E].set(nrm(keys[9], (L, E)))             # ff2 bias
    bias = bias.at[L, 0, :V].set(nrm(keys[10], (V,)))               # decoder bias

    return dict(emb_pe=emb_pe, bias=bias, in_w=in_w, out_w=out_w,
                ff1_w=ff1_w, ff2_w=ff2_w, dec_w=dec_w)


if __name__ == "__main__":
    # TransformerEncoderModel(vocab_size=50, embed_dim=32, num_heads=2,
    #                         hidden_dim=64, num_layers=2, dropout=0.1)
    vocab_size, embed_dim, num_heads, hidden_dim, num_layers = 50, 32, 2, 64, 2
    S, B = 8, 2   # seq-first (S, B) int tokens, like the PyTorch module

    key = jax.random.PRNGKey(0)
    pkey, skey = jax.random.split(key)
    params = init_params(pkey, vocab_size, embed_dim, hidden_dim, num_layers)
    src = jax.random.randint(skey, (S, B), 0, vocab_size, dtype=jnp.int32)

    # TODO(synk): dropout layers are evaluated as identity (eval mode); PyTorch's
    # training-mode RNG dropout has no bit-exact Pallas equivalent.
    out = transformer_encoder_forward(src, params, num_heads=num_heads,
                                      num_layers=num_layers, vocab_size=vocab_size)
    out = jax.block_until_ready(out)
    assert out.shape == (S, B, vocab_size), out.shape
    assert bool(jnp.all(jnp.isfinite(out)))
    print("KERNEL_OK")
</pallas_src>

<mosaic_0001>
module attributes {stable_mosaic.version = 11 : i64} {
  func.func @kernel(%arg0: memref<16x1xi32, #tpu.memory_space<vmem>>, %arg1: memref<120x32xf32, #tpu.memory_space<vmem>>, %arg2: memref<3x8x128xf32, #tpu.memory_space<vmem>>, %arg3: memref<2x32x96xf32, #tpu.memory_space<vmem>>, %arg4: memref<2x32x32xf32, #tpu.memory_space<vmem>>, %arg5: memref<2x32x128xf32, #tpu.memory_space<vmem>>, %arg6: memref<2x128x32xf32, #tpu.memory_space<vmem>>, %arg7: memref<32x128xf32, #tpu.memory_space<vmem>>, %arg8: memref<8x2x128xf32, #tpu.memory_space<vmem>>) attributes {dimension_semantics = [], scalar_prefetch = 0 : i64, scratch_operands = 0 : i64, tpu.core_type = #tpu.core_type<tc>} {
    %c0 = arith.constant 0 : index
    %c0_0 = arith.constant 0 : index
    %0 = vector.load %arg0[%c0, %c0_0] : memref<16x1xi32, #tpu.memory_space<vmem>>, vector<16x1xi32>
    %1 = tpu.iota {dimensions = array<i32: 1>} : vector<16x56xi32>
    %2 = vector.broadcast %0 : vector<16x1xi32> to vector<16x56xi32>
    %3 = arith.cmpi eq, %2, %1 : vector<16x56xi32>
    %4 = arith.extui %3 : vector<16x56xi1> to vector<16x56xi32>
    %5 = arith.sitofp %4 : vector<16x56xi32> to vector<16x56xf32>
    %c0_1 = arith.constant 0 : index
    %c0_2 = arith.constant 0 : index
    %6 = vector.load %arg1[%c0_1, %c0_2] : memref<120x32xf32, #tpu.memory_space<vmem>>, vector<56x32xf32>
    %cst = arith.constant dense<0.000000e+00> : vector<16x32xf32>
    %7 = tpu.matmul %5, %6, %cst {dimension_numbers = #tpu.dot_dimension_numbers<[1], [0], [0], [1], [0, 0, 1, 1], [], []>} : vector<16x56xf32>, vector<56x32xf32>, vector<16x32xf32> -> vector<16x32xf32>
    %cst_3 = arith.constant 5.65685415 : f32
    %8 = vector.broadcast %cst_3 : f32 to vector<16x32xf32>
    %9 = arith.mulf %7, %8 : vector<16x32xf32>
    %10 = vector.shape_cast %9 : vector<16x32xf32> to vector<2x8x32xf32>
    %c56 = arith.constant 56 : index
    %c0_4 = arith.constant 0 : index
    %11 = vector.load %arg1[%c56, %c0_4] : memref<120x32xf32, #tpu.memory_space<vmem>>, vector<8x32xf32>
    %12 = vector.shape_cast %11 : vector<8x32xf32> to vector<1x8x32xf32>
    %13 = vector.broadcast %12 : vector<1x8x32xf32> to vector<2x8x32xf32>
    %14 = arith.addf %10, %13 : vector<2x8x32xf32>
    %15 = vector.shape_cast %14 : vector<2x8x32xf32> to vector<16x32xf32>
    %16 = tpu.iota {dimensions = array<i32: 0>} : vector<8x8xi32>
    %17 = tpu.iota {dimensions = array<i32: 1>} : vector<8x8xi32>
    %18 = arith.cmpi sle, %17, %16 : vector<8x8xi32>
    %cst_5 = arith.constant 0.000000e+00 : f32
    %cst_6 = arith.constant -1.000000e+30 : f32
    %19 = vector.broadcast %cst_5 : f32 to vector<8x8xf32>
    %20 = vector.broadcast %cst_6 : f32 to vector<8x8xf32>
    %21 = arith.select %18, %19, %20 : vector<8x8xi1>, vector<8x8xf32>
    %22 = vector.shape_cast %21 : vector<8x8xf32> to vector<1x8x8xf32>
    %c0_7 = arith.constant 0 : index
    %c0_8 = arith.constant 0 : index
    %c0_9 = arith.constant 0 : index
    %23 = vector.load %arg2[%c0_7, %c0_8, %c0_9] : memref<3x8x128xf32, #tpu.memory_space<vmem>>, vector<1x8x128xf32>
    %24 = vector.shape_cast %23 : vector<1x8x128xf32> to vector<8x128xf32>
    %c0_10 = arith.constant 0 : index
    %c0_11 = arith.constant 0 : index
    %c0_12 = arith.constant 0 : index
    %25 = vector.load %arg3[%c0_10, %c0_11, %c0_12] : memref<2x32x96xf32, #tpu.memory_space<vmem>>, vector<1x32x96xf32>
    %26 = vector.shape_cast %25 : vector<1x32x96xf32> to vector<32x96xf32>
    %27 = arith.truncf %26 : vector<32x96xf32> to vector<32x96xbf16>
    %c0_13 = arith.constant 0 : index
    %c0_14 = arith.constant 0 : index
    %c0_15 = arith.constant 0 : index
    %28 = vector.load %arg4[%c0_13, %c0_14, %c0_15] : memref<2x32x32xf32, #tpu.memory_space<vmem>>, vector<1x32x32xf32>
    %29 = vector.shape_cast %28 : vector<1x32x32xf32> to vector<32x32xf32>
    %30 = arith.truncf %29 : vector<32x32xf32> to vector<32x32xbf16>
    %31 = arith.truncf %15 : vector<16x32xf32> to vector<16x32xbf16>
    %cst_16 = arith.constant dense<0.000000e+00> : vector<16x96xf32>
    %32 = tpu.matmul %31, %27, %cst_16 {dimension_numbers = #tpu.dot_dimension_numbers<[1], [0], [0], [1], [0, 0, 1, 1], [], []>} : vector<16x32xbf16>, vector<32x96xbf16>, vector<16x96xf32> -> vector<16x96xf32>
    %33 = vector.extract_strided_slice %24 {offsets = [0, 0], sizes = [1, 96], strides = [1, 1]} : vector<8x128xf32> to vector<1x96xf32>
    %34 = vector.broadcast %33 : vector<1x96xf32> to vector<16x96xf32>
    %35 = arith.addf %32, %34 : vector<16x96xf32>
    %36 = vector.extract_strided_slice %35 {offsets = [0, 0], sizes = [16, 32], strides = [1, 1]} : vector<16x96xf32> to vector<16x32xf32>
    %cst_17 = arith.constant 2.500000e-01 : f32
    %37 = vector.broadcast %cst_17 : f32 to vector<16x32xf32>
    %38 = arith.mulf %36, %37 : vector<16x32xf32>
    %39 = vector.shape_cast %38 : vector<16x32xf32> to vector<2x8x32xf32>
    %40 = arith.truncf %39 : vector<2x8x32xf32> to vector<2x8x32xbf16>
    %41 = vector.extract_strided_slice %35 {offsets = [0, 32], sizes = [16, 32], strides = [1, 1]} : vector<16x96xf32> to vector<16x32xf32>
    %42 = vector.shape_cast %41 : vector<16x32xf32> to vector<2x8x32xf32>
    %43 = arith.truncf %42 : vector<2x8x32xf32> to vector<2x8x32xbf16>
    %44 = vector.extract_strided_slice %35 {offsets = [0, 64], sizes = [16, 32], strides = [1, 1]} : vector<16x96xf32> to vector<16x32xf32>
    %45 = vector.shape_cast %44 : vector<16x32xf32> to vector<2x8x32xf32>
    %46 = arith.truncf %45 : vector<2x8x32xf32> to vector<2x8x32xbf16>
    %47 = vector.extract_strided_slice %40 {offsets = [0, 0, 0], sizes = [2, 8, 16], strides = [1, 1, 1]} : vector<2x8x32xbf16> to vector<2x8x16xbf16>
    %48 = vector.extract_strided_slice %43 {offsets = [0, 0, 0], sizes = [2, 8, 16], strides = [1, 1, 1]} : vector<2x8x32xbf16> to vector<2x8x16xbf16>
    "tpu.trace_start"() <{level = 10 : i32, message = "bqd,bkd->bqk"}> : () -> ()
    %cst_18 = arith.constant dense<0.000000e+00> : vector<2x8x8xf32>
    %49 = tpu.matmul %47, %48, %cst_18 {dimension_numbers = #tpu.dot_dimension_numbers<[2], [2], [1], [1], [0, 0, 0, 1, 1, 1], [0], [0]>} : vector<2x8x16xbf16>, vector<2x8x16xbf16>, vector<2x8x8xf32> -> vector<2x8x8xf32>
    "tpu.trace_stop"() : () -> ()
    %50 = vector.broadcast %22 : vector<1x8x8xf32> to vector<2x8x8xf32>
    %51 = arith.addf %49, %50 : vector<2x8x8xf32>
    %cst_19 = arith.constant dense<0xFF800000> : vector<2x8xf32>
    %52 = vector.multi_reduction <maximumf>, %51, %cst_19 [2] : vector<2x8x8xf32> to vector<2x8xf32>
    %53 = vector.shape_cast %52 : vector<2x8xf32> to vector<2x8x1xf32>
    %54 = vector.broadcast %53 : vector<2x8x1xf32> to vector<2x8x8xf32>
    %55 = arith.subf %51, %54 : vector<2x8x8xf32>
    %56 = math.exp %55 : vector<2x8x8xf32>
    %cst_20 = arith.constant dense<0.000000e+00> : vector<2x8xf32>
    %57 = vector.multi_reduction <add>, %56, %cst_20 [2] : vector<2x8x8xf32> to vector<2x8xf32>
    %58 = vector.shape_cast %57 : vector<2x8xf32> to vector<2x8x1xf32>
    %59 = tpu.reciprocal %58 {approx = true} : vector<2x8x1xf32> -> vector<2x8x1xf32>
    %60 = vector.broadcast %59 : vector<2x8x1xf32> to vector<2x8x8xf32>
    %61 = arith.mulf %56, %60 : vector<2x8x8xf32>
    %62 = arith.truncf %61 : vector<2x8x8xf32> to vector<2x8x8xbf16>
    %63 = vector.extract_strided_slice %46 {offsets = [0, 0, 0], sizes = [2, 8, 16], strides = [1, 1, 1]} : vector<2x8x32xbf16> to vector<2x8x16xbf16>
    "tpu.trace_start"() <{level = 10 : i32, message = "bqk,bkd->bqd"}> : () -> ()
    %cst_21 = arith.constant dense<0.000000e+00> : vector<2x8x16xf32>
    %64 = tpu.matmul %62, %63, %cst_21 {dimension_numbers = #tpu.dot_dimension_numbers<[2], [1], [1], [2], [0, 0, 0, 1, 1, 2], [0], [0]>} : vector<2x8x8xbf16>, vector<2x8x16xbf16>, vector<2x8x16xf32> -> vector<2x8x16xf32>
    "tpu.trace_stop"() : () -> ()
    %65 = vector.shape_cast %64 : vector<2x8x16xf32> to vector<16x16xf32>
    %66 = arith.truncf %65 : vector<16x16xf32> to vector<16x16xbf16>
    %67 = vector.extract_strided_slice %30 {offsets = [0, 0], sizes = [16, 32], strides = [1, 1]} : vector<32x32xbf16> to vector<16x32xbf16>
    %cst_22 = arith.constant dense<0.000000e+00> : vector<16x32xf32>
    %68 = tpu.matmul %66, %67, %cst_22 {dimension_numbers = #tpu.dot_dimension_numbers<[1], [0], [0], [1], [0, 0, 1, 1], [], []>} : vector<16x16xbf16>, vector<16x32xbf16>, vector<16x32xf32> -> vector<16x32xf32>
    %69 = vector.extract_strided_slice %40 {offsets = [0, 0, 16], sizes = [2, 8, 16], strides = [1, 1, 1]} : vector<2x8x32xbf16> to vector<2x8x16xbf16>
    %70 = vector.extract_strided_slice %43 {offsets = [0, 0, 16], sizes = [2, 8, 16], strides = [1, 1, 1]} : vector<2x8x32xbf16> to vector<2x8x16xbf16>
    "tpu.trace_start"() <{level = 10 : i32, message = "bqd,bkd->bqk"}> : () -> ()
    %cst_23 = arith.constant dense<0.000000e+00> : vector<2x8x8xf32>
    %71 = tpu.matmul %69, %70, %cst_23 {dimension_numbers = #tpu.dot_dimension_numbers<[2], [2], [1], [1], [0, 0, 0, 1, 1, 1], [0], [0]>} : vector<2x8x16xbf16>, vector<2x8x16xbf16>, vector<2x8x8xf32> -> vector<2x8x8xf32>
    "tpu.trace_stop"() : () -> ()
    %72 = vector.broadcast %22 : vector<1x8x8xf32> to vector<2x8x8xf32>
    %73 = arith.addf %71, %72 : vector<2x8x8xf32>
    %cst_24 = arith.constant dense<0xFF800000> : vector<2x8xf32>
    %74 = vector.multi_reduction <maximumf>, %73, %cst_24 [2] : vector<2x8x8xf32> to vector<2x8xf32>
    %75 = vector.shape_cast %74 : vector<2x8xf32> to vector<2x8x1xf32>
    %76 = vector.broadcast %75 : vector<2x8x1xf32> to vector<2x8x8xf32>
    %77 = arith.subf %73, %76 : vector<2x8x8xf32>
    %78 = math.exp %77 : vector<2x8x8xf32>
    %cst_25 = arith.constant dense<0.000000e+00> : vector<2x8xf32>
    %79 = vector.multi_reduction <add>, %78, %cst_25 [2] : vector<2x8x8xf32> to vector<2x8xf32>
    %80 = vector.shape_cast %79 : vector<2x8xf32> to vector<2x8x1xf32>
    %81 = tpu.reciprocal %80 {approx = true} : vector<2x8x1xf32> -> vector<2x8x1xf32>
    %82 = vector.broadcast %81 : vector<2x8x1xf32> to vector<2x8x8xf32>
    %83 = arith.mulf %78, %82 : vector<2x8x8xf32>
    %84 = arith.truncf %83 : vector<2x8x8xf32> to vector<2x8x8xbf16>
    %85 = vector.extract_strided_slice %46 {offsets = [0, 0, 16], sizes = [2, 8, 16], strides = [1, 1, 1]} : vector<2x8x32xbf16> to vector<2x8x16xbf16>
    "tpu.trace_start"() <{level = 10 : i32, message = "bqk,bkd->bqd"}> : () -> ()
    %cst_26 = arith.constant dense<0.000000e+00> : vector<2x8x16xf32>
    %86 = tpu.matmul %84, %85, %cst_26 {dimension_numbers = #tpu.dot_dimension_numbers<[2], [1], [1], [2], [0, 0, 0, 1, 1, 2], [0], [0]>} : vector<2x8x8xbf16>, vector<2x8x16xbf16>, vector<2x8x16xf32> -> vector<2x8x16xf32>
    "tpu.trace_stop"() : () -> ()
    %87 = vector.shape_cast %86 : vector<2x8x16xf32> to vector<16x16xf32>
    %88 = arith.truncf %87 : vector<16x16xf32> to vector<16x16xbf16>
    %89 = vector.extract_strided_slice %30 {offsets = [16, 0], sizes = [16, 32], strides = [1, 1]} : vector<32x32xbf16> to vector<16x32xbf16>
    %cst_27 = arith.constant dense<0.000000e+00> : vector<16x32xf32>
    %90 = tpu.matmul %88, %89, %cst_27 {dimension_numbers = #tpu.dot_dimension_numbers<[1], [0], [0], [1], [0, 0, 1, 1], [], []>} : vector<16x16xbf16>, vector<16x32xbf16>, vector<16x32xf32> -> vector<16x32xf32>
    %91 = arith.addf %68, %90 : vector<16x32xf32>
    %92 = vector.extract_strided_slice %24 {offsets = [1, 0], sizes = [1, 32], strides = [1, 1]} : vector<8x128xf32> to vector<1x32xf32>
    %93 = vector.broadcast %92 : vector<1x32xf32> to vector<16x32xf32>
    %94 = arith.addf %91, %93 : vector<16x32xf32>
    %95 = arith.addf %15, %94 : vector<16x32xf32>
    %96 = vector.extract_strided_slice %24 {offsets = [2, 0], sizes = [1, 32], strides = [1, 1]} : vector<8x128xf32> to vector<1x32xf32>
    %97 = vector.extract_strided_slice %24 {offsets = [3, 0], sizes = [1, 32], strides = [1, 1]} : vector<8x128xf32> to vector<1x32xf32>
    %cst_28 = arith.constant dense<0.000000e+00> : vector<16xf32>
    %98 = vector.multi_reduction <add>, %95, %cst_28 [1] : vector<16x32xf32> to vector<16xf32>
    %99 = vector.shape_cast %98 : vector<16xf32> to vector<16x1xf32>
    %cst_29 = arith.constant 3.200000e+01 : f32
    %100 = vector.broadcast %cst_29 : f32 to vector<16x1xf32>
    %101 = arith.divf %99, %100 : vector<16x1xf32>
    %102 = vector.broadcast %101 : vector<16x1xf32> to vector<16x32xf32>
    %103 = arith.subf %95, %102 : vector<16x32xf32>
    %104 = arith.mulf %103, %103 : vector<16x32xf32>
    %cst_30 = arith.constant dense<0.000000e+00> : vector<16xf32>
    %105 = vector.multi_reduction <add>, %104, %cst_30 [1] : vector<16x32xf32> to vector<16xf32>
    %106 = vector.shape_cast %105 : vector<16xf32> to vector<16x1xf32>
    %cst_31 = arith.constant 3.200000e+01 : f32
    %107 = vector.broadcast %cst_31 : f32 to vector<16x1xf32>
    %108 = arith.divf %106, %107 : vector<16x1xf32>
    %109 = vector.broadcast %101 : vector<16x1xf32> to vector<16x32xf32>
    %110 = arith.subf %95, %109 : vector<16x32xf32>
    %cst_32 = arith.constant 9.99999974E-6 : f32
    %111 = vector.broadcast %cst_32 : f32 to vector<16x1xf32>
    %112 = arith.addf %108, %111 : vector<16x1xf32>
    %113 = math.rsqrt %112 : vector<16x1xf32>
    %114 = vector.broadcast %113 : vector<16x1xf32> to vector<16x32xf32>
    %115 = arith.mulf %110, %114 : vector<16x32xf32>
    %116 = vector.broadcast %96 : vector<1x32xf32> to vector<16x32xf32>
    %117 = arith.mulf %115, %116 : vector<16x32xf32>
    %118 = vector.broadcast %97 : vector<1x32xf32> to vector<16x32xf32>
    %119 = arith.addf %117, %118 : vector<16x32xf32>
    %120 = arith.truncf %119 : vector<16x32xf32> to vector<16x32xbf16>
    %c0_33 = arith.constant 0 : index
    %c0_34 = arith.constant 0 : index
    %c0_35 = arith.constant 0 : index
    %121 = vector.load %arg5[%c0_33, %c0_34, %c0_35] : memref<2x32x128xf32, #tpu.memory_space<vmem>>, vector<1x32x128xf32>
    %122 = vector.shape_cast %121 : vector<1x32x128xf32> to vector<32x128xf32>
    %123 = arith.truncf %122 : vector<32x128xf32> to vector<32x128xbf16>
    %cst_36 = arith.constant dense<0.000000e+00> : vector<16x128xf32>
    %124 = tpu.matmul %120, %123, %cst_36 {dimension_numbers = #tpu.dot_dimension_numbers<[1], [0], [0], [1], [0, 0, 1, 1], [], []>} : vector<16x32xbf16>, vector<32x128xbf16>, vector<16x128xf32> -> vector<16x128xf32>
    %125 = vector.extract_strided_slice %24 {offsets = [6, 0], sizes = [1, 128], strides = [1, 1]} : vector<8x128xf32> to vector<1x128xf32>
    %126 = vector.broadcast %125 : vector<1x128xf32> to vector<16x128xf32>
    %127 = arith.addf %124, %126 : vector<16x128xf32>
    %cst_37 = arith.constant 0.000000e+00 : f32
    %128 = vector.broadcast %cst_37 : f32 to vector<16x128xf32>
    %129 = arith.maximumf %127, %128 : vector<16x128xf32>
    %130 = arith.truncf %129 : vector<16x128xf32> to vector<16x128xbf16>
    %c0_38 = arith.constant 0 : index
    %c0_39 = arith.constant 0 : index
    %c0_40 = arith.constant 0 : index
    %131 = vector.load %arg6[%c0_38, %c0_39, %c0_40] : memref<2x128x32xf32, #tpu.memory_space<vmem>>, vector<1x128x32xf32>
    %132 = vector.shape_cast %131 : vector<1x128x32xf32> to vector<128x32xf32>
    %133 = arith.truncf %132 : vector<128x32xf32> to vector<128x32xbf16>
    %cst_41 = arith.constant dense<0.000000e+00> : vector<16x32xf32>
    %134 = tpu.matmul %130, %133, %cst_41 {dimension_numbers = #tpu.dot_dimension_numbers<[1], [0], [0], [1], [0, 0, 1, 1], [], []>} : vector<16x128xbf16>, vector<128x32xbf16>, vector<16x32xf32> -> vector<16x32xf32>
    %135 = vector.extract_strided_slice %24 {offsets = [7, 0], sizes = [1, 32], strides = [1, 1]} : vector<8x128xf32> to vector<1x32xf32>
    %136 = vector.broadcast %135 : vector<1x32xf32> to vector<16x32xf32>
    %137 = arith.addf %134, %136 : vector<16x32xf32>
    %138 = arith.addf %119, %137 : vector<16x32xf32>
    %139 = vector.extract_strided_slice %24 {offsets = [4, 0], sizes = [1, 32], strides = [1, 1]} : vector<8x128xf32> to vector<1x32xf32>
    %140 = vector.extract_strided_slice %24 {offsets = [5, 0], sizes = [1, 32], strides = [1, 1]} : vector<8x128xf32> to vector<1x32xf32>
    %cst_42 = arith.constant dense<0.000000e+00> : vector<16xf32>
    %141 = vector.multi_reduction <add>, %138, %cst_42 [1] : vector<16x32xf32> to vector<16xf32>
    %142 = vector.shape_cast %141 : vector<16xf32> to vector<16x1xf32>
    %cst_43 = arith.constant 3.200000e+01 : f32
    %143 = vector.broadcast %cst_43 : f32 to vector<16x1xf32>
    %144 = arith.divf %142, %143 : vector<16x1xf32>
    %145 = vector.broadcast %144 : vector<16x1xf32> to vector<16x32xf32>
    %146 = arith.subf %138, %145 : vector<16x32xf32>
    %147 = arith.mulf %146, %146 : vector<16x32xf32>
    %cst_44 = arith.constant dense<0.000000e+00> : vector<16xf32>
    %148 = vector.multi_reduction <add>, %147, %cst_44 [1] : vector<16x32xf32> to vector<16xf32>
    %149 = vector.shape_cast %148 : vector<16xf32> to vector<16x1xf32>
    %cst_45 = arith.constant 3.200000e+01 : f32
    %150 = vector.broadcast %cst_45 : f32 to vector<16x1xf32>
    %151 = arith.divf %149, %150 : vector<16x1xf32>
    %152 = vector.broadcast %144 : vector<16x1xf32> to vector<16x32xf32>
    %153 = arith.subf %138, %152 : vector<16x32xf32>
    %cst_46 = arith.constant 9.99999974E-6 : f32
    %154 = vector.broadcast %cst_46 : f32 to vector<16x1xf32>
    %155 = arith.addf %151, %154 : vector<16x1xf32>
    %156 = math.rsqrt %155 : vector<16x1xf32>
    %157 = vector.broadcast %156 : vector<16x1xf32> to vector<16x32xf32>
    %158 = arith.mulf %153, %157 : vector<16x32xf32>
    %159 = vector.broadcast %139 : vector<1x32xf32> to vector<16x32xf32>
    %160 = arith.mulf %158, %159 : vector<16x32xf32>
    %161 = vector.broadcast %140 : vector<1x32xf32> to vector<16x32xf32>
    %162 = arith.addf %160, %161 : vector<16x32xf32>
    %c1 = arith.constant 1 : index
    %c0_47 = arith.constant 0 : index
    %c0_48 = arith.constant 0 : index
    %163 = vector.load %arg2[%c1, %c0_47, %c0_48] : memref<3x8x128xf32, #tpu.memory_space<vmem>>, vector<1x8x128xf32>
    %164 = vector.shape_cast %163 : vector<1x8x128xf32> to vector<8x128xf32>
    %c1_49 = arith.constant 1 : index
    %c0_50 = arith.constant 0 : index
    %c0_51 = arith.constant 0 : index
    %165 = vector.load %arg3[%c1_49, %c0_50, %c0_51] : memref<2x32x96xf32, #tpu.memory_space<vmem>>, vector<1x32x96xf32>
    %166 = vector.shape_cast %165 : vector<1x32x96xf32> to vector<32x96xf32>
    %167 = arith.truncf %166 : vector<32x96xf32> to vector<32x96xbf16>
    %c1_52 = arith.constant 1 : index
    %c0_53 = arith.constant 0 : index
    %c0_54 = arith.constant 0 : index
    %168 = vector.load %arg4[%c1_52, %c0_53, %c0_54] : memref<2x32x32xf32, #tpu.memory_space<vmem>>, vector<1x32x32xf32>
    %169 = vector.shape_cast %168 : vector<1x32x32xf32> to vector<32x32xf32>
    %170 = arith.truncf %169 : vector<32x32xf32> to vector<32x32xbf16>
    %171 = arith.truncf %162 : vector<16x32xf32> to vector<16x32xbf16>
    %cst_55 = arith.constant dense<0.000000e+00> : vector<16x96xf32>
    %172 = tpu.matmul %171, %167, %cst_55 {dimension_numbers = #tpu.dot_dimension_numbers<[1], [0], [0], [1], [0, 0, 1, 1], [], []>} : vector<16x32xbf16>, vector<32x96xbf16>, vector<16x96xf32> -> vector<16x96xf32>
    %173 = vector.extract_strided_slice %164 {offsets = [0, 0], sizes = [1, 96], strides = [1, 1]} : vector<8x128xf32> to vector<1x96xf32>
    %174 = vector.broadcast %173 : vector<1x96xf32> to vector<16x96xf32>
    %175 = arith.addf %172, %174 : vector<16x96xf32>
    %176 = vector.extract_strided_slice %175 {offsets = [0, 0], sizes = [16, 32], strides = [1, 1]} : vector<16x96xf32> to vector<16x32xf32>
    %cst_56 = arith.constant 2.500000e-01 : f32
    %177 = vector.broadcast %cst_56 : f32 to vector<16x32xf32>
    %178 = arith.mulf %176, %177 : vector<16x32xf32>
    %179 = vector.shape_cast %178 : vector<16x32xf32> to vector<2x8x32xf32>
    %180 = arith.truncf %179 : vector<2x8x32xf32> to vector<2x8x32xbf16>
    %181 = vector.extract_strided_slice %175 {offsets = [0, 32], sizes = [16, 32], strides = [1, 1]} : vector<16x96xf32> to vector<16x32xf32>
    %182 = vector.shape_cast %181 : vector<16x32xf32> to vector<2x8x32xf32>
    %183 = arith.truncf %182 : vector<2x8x32xf32> to vector<2x8x32xbf16>
    %184 = vector.extract_strided_slice %175 {offsets = [0, 64], sizes = [16, 32], strides = [1, 1]} : vector<16x96xf32> to vector<16x32xf32>
    %185 = vector.shape_cast %184 : vector<16x32xf32> to vector<2x8x32xf32>
    %186 = arith.truncf %185 : vector<2x8x32xf32> to vector<2x8x32xbf16>
    %187 = vector.extract_strided_slice %180 {offsets = [0, 0, 0], sizes = [2, 8, 16], strides = [1, 1, 1]} : vector<2x8x32xbf16> to vector<2x8x16xbf16>
    %188 = vector.extract_strided_slice %183 {offsets = [0, 0, 0], sizes = [2, 8, 16], strides = [1, 1, 1]} : vector<2x8x32xbf16> to vector<2x8x16xbf16>
    "tpu.trace_start"() <{level = 10 : i32, message = "bqd,bkd->bqk"}> : () -> ()
    %cst_57 = arith.constant dense<0.000000e+00> : vector<2x8x8xf32>
    %189 = tpu.matmul %187, %188, %cst_57 {dimension_numbers = #tpu.dot_dimension_numbers<[2], [2], [1], [1], [0, 0, 0, 1, 1, 1], [0], [0]>} : vector<2x8x16xbf16>, vector<2x8x16xbf16>, vector<2x8x8xf32> -> vector<2x8x8xf32>
    "tpu.trace_stop"() : () -> ()
    %190 = vector.broadcast %22 : vector<1x8x8xf32> to vector<2x8x8xf32>
    %191 = arith.addf %189, %190 : vector<2x8x8xf32>
    %cst_58 = arith.constant dense<0xFF800000> : vector<2x8xf32>
    %192 = vector.multi_reduction <maximumf>, %191, %cst_58 [2] : vector<2x8x8xf32> to vector<2x8xf32>
    %193 = vector.shape_cast %192 : vector<2x8xf32> to vector<2x8x1xf32>
    %194 = vector.broadcast %193 : vector<2x8x1xf32> to vector<2x8x8xf32>
    %195 = arith.subf %191, %194 : vector<2x8x8xf32>
    %196 = math.exp %195 : vector<2x8x8xf32>
    %cst_59 = arith.constant dense<0.000000e+00> : vector<2x8xf32>
    %197 = vector.multi_reduction <add>, %196, %cst_59 [2] : vector<2x8x8xf32> to vector<2x8xf32>
    %198 = vector.shape_cast %197 : vector<2x8xf32> to vector<2x8x1xf32>
    %199 = tpu.reciprocal %198 {approx = true} : vector<2x8x1xf32> -> vector<2x8x1xf32>
    %200 = vector.broadcast %199 : vector<2x8x1xf32> to vector<2x8x8xf32>
    %201 = arith.mulf %196, %200 : vector<2x8x8xf32>
    %202 = arith.truncf %201 : vector<2x8x8xf32> to vector<2x8x8xbf16>
    %203 = vector.extract_strided_slice %186 {offsets = [0, 0, 0], sizes = [2, 8, 16], strides = [1, 1, 1]} : vector<2x8x32xbf16> to vector<2x8x16xbf16>
    "tpu.trace_start"() <{level = 10 : i32, message = "bqk,bkd->bqd"}> : () -> ()
    %cst_60 = arith.constant dense<0.000000e+00> : vector<2x8x16xf32>
    %204 = tpu.matmul %202, %203, %cst_60 {dimension_numbers = #tpu.dot_dimension_numbers<[2], [1], [1], [2], [0, 0, 0, 1, 1, 2], [0], [0]>} : vector<2x8x8xbf16>, vector<2x8x16xbf16>, vector<2x8x16xf32> -> vector<2x8x16xf32>
    "tpu.trace_stop"() : () -> ()
    %205 = vector.shape_cast %204 : vector<2x8x16xf32> to vector<16x16xf32>
    %206 = arith.truncf %205 : vector<16x16xf32> to vector<16x16xbf16>
    %207 = vector.extract_strided_slice %170 {offsets = [0, 0], sizes = [16, 32], strides = [1, 1]} : vector<32x32xbf16> to vector<16x32xbf16>
    %cst_61 = arith.constant dense<0.000000e+00> : vector<16x32xf32>
    %208 = tpu.matmul %206, %207, %cst_61 {dimension_numbers = #tpu.dot_dimension_numbers<[1], [0], [0], [1], [0, 0, 1, 1], [], []>} : vector<16x16xbf16>, vector<16x32xbf16>, vector<16x32xf32> -> vector<16x32xf32>
    %209 = vector.extract_strided_slice %180 {offsets = [0, 0, 16], sizes = [2, 8, 16], strides = [1, 1, 1]} : vector<2x8x32xbf16> to vector<2x8x16xbf16>
    %210 = vector.extract_strided_slice %183 {offsets = [0, 0, 16], sizes = [2, 8, 16], strides = [1, 1, 1]} : vector<2x8x32xbf16> to vector<2x8x16xbf16>
    "tpu.trace_start"() <{level = 10 : i32, message = "bqd,bkd->bqk"}> : () -> ()
    %cst_62 = arith.constant dense<0.000000e+00> : vector<2x8x8xf32>
    %211 = tpu.matmul %209, %210, %cst_62 {dimension_numbers = #tpu.dot_dimension_numbers<[2], [2], [1], [1], [0, 0, 0, 1, 1, 1], [0], [0]>} : vector<2x8x16xbf16>, vector<2x8x16xbf16>, vector<2x8x8xf32> -> vector<2x8x8xf32>
    "tpu.trace_stop"() : () -> ()
    %212 = vector.broadcast %22 : vector<1x8x8xf32> to vector<2x8x8xf32>
    %213 = arith.addf %211, %212 : vector<2x8x8xf32>
    %cst_63 = arith.constant dense<0xFF800000> : vector<2x8xf32>
    %214 = vector.multi_reduction <maximumf>, %213, %cst_63 [2] : vector<2x8x8xf32> to vector<2x8xf32>
    %215 = vector.shape_cast %214 : vector<2x8xf32> to vector<2x8x1xf32>
    %216 = vector.broadcast %215 : vector<2x8x1xf32> to vector<2x8x8xf32>
    %217 = arith.subf %213, %216 : vector<2x8x8xf32>
    %218 = math.exp %217 : vector<2x8x8xf32>
    %cst_64 = arith.constant dense<0.000000e+00> : vector<2x8xf32>
    %219 = vector.multi_reduction <add>, %218, %cst_64 [2] : vector<2x8x8xf32> to vector<2x8xf32>
    %220 = vector.shape_cast %219 : vector<2x8xf32> to vector<2x8x1xf32>
    %221 = tpu.reciprocal %220 {approx = true} : vector<2x8x1xf32> -> vector<2x8x1xf32>
    %222 = vector.broadcast %221 : vector<2x8x1xf32> to vector<2x8x8xf32>
    %223 = arith.mulf %218, %222 : vector<2x8x8xf32>
    %224 = arith.truncf %223 : vector<2x8x8xf32> to vector<2x8x8xbf16>
    %225 = vector.extract_strided_slice %186 {offsets = [0, 0, 16], sizes = [2, 8, 16], strides = [1, 1, 1]} : vector<2x8x32xbf16> to vector<2x8x16xbf16>
    "tpu.trace_start"() <{level = 10 : i32, message = "bqk,bkd->bqd"}> : () -> ()
    %cst_65 = arith.constant dense<0.000000e+00> : vector<2x8x16xf32>
    %226 = tpu.matmul %224, %225, %cst_65 {dimension_numbers = #tpu.dot_dimension_numbers<[2], [1], [1], [2], [0, 0, 0, 1, 1, 2], [0], [0]>} : vector<2x8x8xbf16>, vector<2x8x16xbf16>, vector<2x8x16xf32> -> vector<2x8x16xf32>
    "tpu.trace_stop"() : () -> ()
    %227 = vector.shape_cast %226 : vector<2x8x16xf32> to vector<16x16xf32>
    %228 = arith.truncf %227 : vector<16x16xf32> to vector<16x16xbf16>
    %229 = vector.extract_strided_slice %170 {offsets = [16, 0], sizes = [16, 32], strides = [1, 1]} : vector<32x32xbf16> to vector<16x32xbf16>
    %cst_66 = arith.constant dense<0.000000e+00> : vector<16x32xf32>
    %230 = tpu.matmul %228, %229, %cst_66 {dimension_numbers = #tpu.dot_dimension_numbers<[1], [0], [0], [1], [0, 0, 1, 1], [], []>} : vector<16x16xbf16>, vector<16x32xbf16>, vector<16x32xf32> -> vector<16x32xf32>
    %231 = arith.addf %208, %230 : vector<16x32xf32>
    %232 = vector.extract_strided_slice %164 {offsets = [1, 0], sizes = [1, 32], strides = [1, 1]} : vector<8x128xf32> to vector<1x32xf32>
    %233 = vector.broadcast %232 : vector<1x32xf32> to vector<16x32xf32>
    %234 = arith.addf %231, %233 : vector<16x32xf32>
    %235 = arith.addf %162, %234 : vector<16x32xf32>
    %236 = vector.extract_strided_slice %164 {offsets = [2, 0], sizes = [1, 32], strides = [1, 1]} : vector<8x128xf32> to vector<1x32xf32>
    %237 = vector.extract_strided_slice %164 {offsets = [3, 0], sizes = [1, 32], strides = [1, 1]} : vector<8x128xf32> to vector<1x32xf32>
    %cst_67 = arith.constant dense<0.000000e+00> : vector<16xf32>
    %238 = vector.multi_reduction <add>, %235, %cst_67 [1] : vector<16x32xf32> to vector<16xf32>
    %239 = vector.shape_cast %238 : vector<16xf32> to vector<16x1xf32>
    %cst_68 = arith.constant 3.200000e+01 : f32
    %240 = vector.broadcast %cst_68 : f32 to vector<16x1xf32>
    %241 = arith.divf %239, %240 : vector<16x1xf32>
    %242 = vector.broadcast %241 : vector<16x1xf32> to vector<16x32xf32>
    %243 = arith.subf %235, %242 : vector<16x32xf32>
    %244 = arith.mulf %243, %243 : vector<16x32xf32>
    %cst_69 = arith.constant dense<0.000000e+00> : vector<16xf32>
    %245 = vector.multi_reduction <add>, %244, %cst_69 [1] : vector<16x32xf32> to vector<16xf32>
    %246 = vector.shape_cast %245 : vector<16xf32> to vector<16x1xf32>
    %cst_70 = arith.constant 3.200000e+01 : f32
    %247 = vector.broadcast %cst_70 : f32 to vector<16x1xf32>
    %248 = arith.divf %246, %247 : vector<16x1xf32>
    %249 = vector.broadcast %241 : vector<16x1xf32> to vector<16x32xf32>
    %250 = arith.subf %235, %249 : vector<16x32xf32>
    %cst_71 = arith.constant 9.99999974E-6 : f32
    %251 = vector.broadcast %cst_71 : f32 to vector<16x1xf32>
    %252 = arith.addf %248, %251 : vector<16x1xf32>
    %253 = math.rsqrt %252 : vector<16x1xf32>
    %254 = vector.broadcast %253 : vector<16x1xf32> to vector<16x32xf32>
    %255 = arith.mulf %250, %254 : vector<16x32xf32>
    %256 = vector.broadcast %236 : vector<1x32xf32> to vector<16x32xf32>
    %257 = arith.mulf %255, %256 : vector<16x32xf32>
    %258 = vector.broadcast %237 : vector<1x32xf32> to vector<16x32xf32>
    %259 = arith.addf %257, %258 : vector<16x32xf32>
    %260 = arith.truncf %259 : vector<16x32xf32> to vector<16x32xbf16>
    %c1_72 = arith.constant 1 : index
    %c0_73 = arith.constant 0 : index
    %c0_74 = arith.constant 0 : index
    %261 = vector.load %arg5[%c1_72, %c0_73, %c0_74] : memref<2x32x128xf32, #tpu.memory_space<vmem>>, vector<1x32x128xf32>
    %262 = vector.shape_cast %261 : vector<1x32x128xf32> to vector<32x128xf32>
    %263 = arith.truncf %262 : vector<32x128xf32> to vector<32x128xbf16>
    %cst_75 = arith.constant dense<0.000000e+00> : vector<16x128xf32>
    %264 = tpu.matmul %260, %263, %cst_75 {dimension_numbers = #tpu.dot_dimension_numbers<[1], [0], [0], [1], [0, 0, 1, 1], [], []>} : vector<16x32xbf16>, vector<32x128xbf16>, vector<16x128xf32> -> vector<16x128xf32>
    %265 = vector.extract_strided_slice %164 {offsets = [6, 0], sizes = [1, 128], strides = [1, 1]} : vector<8x128xf32> to vector<1x128xf32>
    %266 = vector.broadcast %265 : vector<1x128xf32> to vector<16x128xf32>
    %267 = arith.addf %264, %266 : vector<16x128xf32>
    %cst_76 = arith.constant 0.000000e+00 : f32
    %268 = vector.broadcast %cst_76 : f32 to vector<16x128xf32>
    %269 = arith.maximumf %267, %268 : vector<16x128xf32>
    %270 = arith.truncf %269 : vector<16x128xf32> to vector<16x128xbf16>
    %c1_77 = arith.constant 1 : index
    %c0_78 = arith.constant 0 : index
    %c0_79 = arith.constant 0 : index
    %271 = vector.load %arg6[%c1_77, %c0_78, %c0_79] : memref<2x128x32xf32, #tpu.memory_space<vmem>>, vector<1x128x32xf32>
    %272 = vector.shape_cast %271 : vector<1x128x32xf32> to vector<128x32xf32>
    %273 = arith.truncf %272 : vector<128x32xf32> to vector<128x32xbf16>
    %cst_80 = arith.constant dense<0.000000e+00> : vector<16x32xf32>
    %274 = tpu.matmul %270, %273, %cst_80 {dimension_numbers = #tpu.dot_dimension_numbers<[1], [0], [0], [1], [0, 0, 1, 1], [], []>} : vector<16x128xbf16>, vector<128x32xbf16>, vector<16x32xf32> -> vector<16x32xf32>
    %275 = vector.extract_strided_slice %164 {offsets = [7, 0], sizes = [1, 32], strides = [1, 1]} : vector<8x128xf32> to vector<1x32xf32>
    %276 = vector.broadcast %275 : vector<1x32xf32> to vector<16x32xf32>
    %277 = arith.addf %274, %276 : vector<16x32xf32>
    %278 = arith.addf %259, %277 : vector<16x32xf32>
    %279 = vector.extract_strided_slice %164 {offsets = [4, 0], sizes = [1, 32], strides = [1, 1]} : vector<8x128xf32> to vector<1x32xf32>
    %280 = vector.extract_strided_slice %164 {offsets = [5, 0], sizes = [1, 32], strides = [1, 1]} : vector<8x128xf32> to vector<1x32xf32>
    %cst_81 = arith.constant dense<0.000000e+00> : vector<16xf32>
    %281 = vector.multi_reduction <add>, %278, %cst_81 [1] : vector<16x32xf32> to vector<16xf32>
    %282 = vector.shape_cast %281 : vector<16xf32> to vector<16x1xf32>
    %cst_82 = arith.constant 3.200000e+01 : f32
    %283 = vector.broadcast %cst_82 : f32 to vector<16x1xf32>
    %284 = arith.divf %282, %283 : vector<16x1xf32>
    %285 = vector.broadcast %284 : vector<16x1xf32> to vector<16x32xf32>
    %286 = arith.subf %278, %285 : vector<16x32xf32>
    %287 = arith.mulf %286, %286 : vector<16x32xf32>
    %cst_83 = arith.constant dense<0.000000e+00> : vector<16xf32>
    %288 = vector.multi_reduction <add>, %287, %cst_83 [1] : vector<16x32xf32> to vector<16xf32>
    %289 = vector.shape_cast %288 : vector<16xf32> to vector<16x1xf32>
    %cst_84 = arith.constant 3.200000e+01 : f32
    %290 = vector.broadcast %cst_84 : f32 to vector<16x1xf32>
    %291 = arith.divf %289, %290 : vector<16x1xf32>
    %292 = vector.broadcast %284 : vector<16x1xf32> to vector<16x32xf32>
    %293 = arith.subf %278, %292 : vector<16x32xf32>
    %cst_85 = arith.constant 9.99999974E-6 : f32
    %294 = vector.broadcast %cst_85 : f32 to vector<16x1xf32>
    %295 = arith.addf %291, %294 : vector<16x1xf32>
    %296 = math.rsqrt %295 : vector<16x1xf32>
    %297 = vector.broadcast %296 : vector<16x1xf32> to vector<16x32xf32>
    %298 = arith.mulf %293, %297 : vector<16x32xf32>
    %299 = vector.broadcast %279 : vector<1x32xf32> to vector<16x32xf32>
    %300 = arith.mulf %298, %299 : vector<16x32xf32>
    %301 = vector.broadcast %280 : vector<1x32xf32> to vector<16x32xf32>
    %302 = arith.addf %300, %301 : vector<16x32xf32>
    %c2 = arith.constant 2 : index
    %c0_86 = arith.constant 0 : index
    %c0_87 = arith.constant 0 : index
    %303 = vector.load %arg2[%c2, %c0_86, %c0_87] : memref<3x8x128xf32, #tpu.memory_space<vmem>>, vector<1x8x128xf32>
    %304 = vector.shape_cast %303 : vector<1x8x128xf32> to vector<8x128xf32>
    %305 = arith.truncf %302 : vector<16x32xf32> to vector<16x32xbf16>
    %c0_88 = arith.constant 0 : index
    %c0_89 = arith.constant 0 : index
    %306 = vector.load %arg7[%c0_88, %c0_89] : memref<32x128xf32, #tpu.memory_space<vmem>>, vector<32x128xf32>
    %307 = arith.truncf %306 : vector<32x128xf32> to vector<32x128xbf16>
    %cst_90 = arith.constant dense<0.000000e+00> : vector<16x128xf32>
    %308 = tpu.matmul %305, %307, %cst_90 {dimension_numbers = #tpu.dot_dimension_numbers<[1], [0], [0], [1], [0, 0, 1, 1], [], []>} : vector<16x32xbf16>, vector<32x128xbf16>, vector<16x128xf32> -> vector<16x128xf32>
    %309 = vector.extract_strided_slice %304 {offsets = [0, 0], sizes = [1, 128], strides = [1, 1]} : vector<8x128xf32> to vector<1x128xf32>
    %310 = vector.broadcast %309 : vector<1x128xf32> to vector<16x128xf32>
    %311 = arith.addf %308, %310 : vector<16x128xf32>
    %312 = vector.shape_cast %311 : vector<16x128xf32> to vector<2x8x128xf32>
    %313 = vector.extract_strided_slice %312 {offsets = [0, 0, 0], sizes = [2, 1, 128], strides = [1, 1, 1]} : vector<2x8x128xf32> to vector<2x1x128xf32>
    %314 = vector.shape_cast %313 : vector<2x1x128xf32> to vector<2x128xf32>
    %c0_91 = arith.constant 0 : index
    %c0_92 = arith.constant 0 : index
    %c0_93 = arith.constant 0 : index
    %315 = vector.load %arg8[%c0_91, %c0_92, %c0_93] : memref<8x2x128xf32, #tpu.memory_space<vmem>>, vector<1x2x128xf32>
    %316 = vector.shape_cast %315 : vector<1x2x128xf32> to vector<2x128xf32>
    %317 = vector.shape_cast %314 : vector<2x128xf32> to vector<1x2x128xf32>
    tpu.vector_store %arg8[%c0_91, %c0_92, %c0_93], %317 {strides = array<i32>} : memref<8x2x128xf32, #tpu.memory_space<vmem>>, vector<1x2x128xf32>,
    %318 = vector.extract_strided_slice %312 {offsets = [0, 1, 0], sizes = [2, 1, 128], strides = [1, 1, 1]} : vector<2x8x128xf32> to vector<2x1x128xf32>
    %319 = vector.shape_cast %318 : vector<2x1x128xf32> to vector<2x128xf32>
    %c1_94 = arith.constant 1 : index
    %c0_95 = arith.constant 0 : index
    %c0_96 = arith.constant 0 : index
    %320 = vector.load %arg8[%c1_94, %c0_95, %c0_96] : memref<8x2x128xf32, #tpu.memory_space<vmem>>, vector<1x2x128xf32>
    %321 = vector.shape_cast %320 : vector<1x2x128xf32> to vector<2x128xf32>
    %322 = vector.shape_cast %319 : vector<2x128xf32> to vector<1x2x128xf32>
    tpu.vector_store %arg8[%c1_94, %c0_95, %c0_96], %322 {strides = array<i32>} : memref<8x2x128xf32, #tpu.memory_space<vmem>>, vector<1x2x128xf32>,
    %323 = vector.extract_strided_slice %312 {offsets = [0, 2, 0], sizes = [2, 1, 128], strides = [1, 1, 1]} : vector<2x8x128xf32> to vector<2x1x128xf32>
    %324 = vector.shape_cast %323 : vector<2x1x128xf32> to vector<2x128xf32>
    %c2_97 = arith.constant 2 : index
    %c0_98 = arith.constant 0 : index
    %c0_99 = arith.constant 0 : index
    %325 = vector.load %arg8[%c2_97, %c0_98, %c0_99] : memref<8x2x128xf32, #tpu.memory_space<vmem>>, vector<1x2x128xf32>
    %326 = vector.shape_cast %325 : vector<1x2x128xf32> to vector<2x128xf32>
    %327 = vector.shape_cast %324 : vector<2x128xf32> to vector<1x2x128xf32>
    tpu.vector_store %arg8[%c2_97, %c0_98, %c0_99], %327 {strides = array<i32>} : memref<8x2x128xf32, #tpu.memory_space<vmem>>, vector<1x2x128xf32>,
    %328 = vector.extract_strided_slice %312 {offsets = [0, 3, 0], sizes = [2, 1, 128], strides = [1, 1, 1]} : vector<2x8x128xf32> to vector<2x1x128xf32>
    %329 = vector.shape_cast %328 : vector<2x1x128xf32> to vector<2x128xf32>
    %c3 = arith.constant 3 : index
    %c0_100 = arith.constant 0 : index
    %c0_101 = arith.constant 0 : index
    %330 = vector.load %arg8[%c3, %c0_100, %c0_101] : memref<8x2x128xf32, #tpu.memory_space<vmem>>, vector<1x2x128xf32>
    %331 = vector.shape_cast %330 : vector<1x2x128xf32> to vector<2x128xf32>
    %332 = vector.shape_cast %329 : vector<2x128xf32> to vector<1x2x128xf32>
    tpu.vector_store %arg8[%c3, %c0_100, %c0_101], %332 {strides = array<i32>} : memref<8x2x128xf32, #tpu.memory_space<vmem>>, vector<1x2x128xf32>,
    %333 = vector.extract_strided_slice %312 {offsets = [0, 4, 0], sizes = [2, 1, 128], strides = [1, 1, 1]} : vector<2x8x128xf32> to vector<2x1x128xf32>
    %334 = vector.shape_cast %333 : vector<2x1x128xf32> to vector<2x128xf32>
    %c4 = arith.constant 4 : index
    %c0_102 = arith.constant 0 : index
    %c0_103 = arith.constant 0 : index
    %335 = vector.load %arg8[%c4, %c0_102, %c0_103] : memref<8x2x128xf32, #tpu.memory_space<vmem>>, vector<1x2x128xf32>
    %336 = vector.shape_cast %335 : vector<1x2x128xf32> to vector<2x128xf32>
    %337 = vector.shape_cast %334 : vector<2x128xf32> to vector<1x2x128xf32>
    tpu.vector_store %arg8[%c4, %c0_102, %c0_103], %337 {strides = array<i32>} : memref<8x2x128xf32, #tpu.memory_space<vmem>>, vector<1x2x128xf32>,
    %338 = vector.extract_strided_slice %312 {offsets = [0, 5, 0], sizes = [2, 1, 128], strides = [1, 1, 1]} : vector<2x8x128xf32> to vector<2x1x128xf32>
    %339 = vector.shape_cast %338 : vector<2x1x128xf32> to vector<2x128xf32>
    %c5 = arith.constant 5 : index
    %c0_104 = arith.constant 0 : index
    %c0_105 = arith.constant 0 : index
    %340 = vector.load %arg8[%c5, %c0_104, %c0_105] : memref<8x2x128xf32, #tpu.memory_space<vmem>>, vector<1x2x128xf32>
    %341 = vector.shape_cast %340 : vector<1x2x128xf32> to vector<2x128xf32>
    %342 = vector.shape_cast %339 : vector<2x128xf32> to vector<1x2x128xf32>
    tpu.vector_store %arg8[%c5, %c0_104, %c0_105], %342 {strides = array<i32>} : memref<8x2x128xf32, #tpu.memory_space<vmem>>, vector<1x2x128xf32>,
    %343 = vector.extract_strided_slice %312 {offsets = [0, 6, 0], sizes = [2, 1, 128], strides = [1, 1, 1]} : vector<2x8x128xf32> to vector<2x1x128xf32>
    %344 = vector.shape_cast %343 : vector<2x1x128xf32> to vector<2x128xf32>
    %c6 = arith.constant 6 : index
    %c0_106 = arith.constant 0 : index
    %c0_107 = arith.constant 0 : index
    %345 = vector.load %arg8[%c6, %c0_106, %c0_107] : memref<8x2x128xf32, #tpu.memory_space<vmem>>, vector<1x2x128xf32>
    %346 = vector.shape_cast %345 : vector<1x2x128xf32> to vector<2x128xf32>
    %347 = vector.shape_cast %344 : vector<2x128xf32> to vector<1x2x128xf32>
    tpu.vector_store %arg8[%c6, %c0_106, %c0_107], %347 {strides = array<i32>} : memref<8x2x128xf32, #tpu.memory_space<vmem>>, vector<1x2x128xf32>,
    %348 = vector.extract_strided_slice %312 {offsets = [0, 7, 0], sizes = [2, 1, 128], strides = [1, 1, 1]} : vector<2x8x128xf32> to vector<2x1x128xf32>
    %349 = vector.shape_cast %348 : vector<2x1x128xf32> to vector<2x128xf32>
    %c7 = arith.constant 7 : index
    %c0_108 = arith.constant 0 : index
    %c0_109 = arith.constant 0 : index
    %350 = vector.load %arg8[%c7, %c0_108, %c0_109] : memref<8x2x128xf32, #tpu.memory_space<vmem>>, vector<1x2x128xf32>
    %351 = vector.shape_cast %350 : vector<1x2x128xf32> to vector<2x128xf32>
    %352 = vector.shape_cast %349 : vector<2x128xf32> to vector<1x2x128xf32>
    tpu.vector_store %arg8[%c7, %c0_108, %c0_109], %352 {strides = array<i32>} : memref<8x2x128xf32, #tpu.memory_space<vmem>>, vector<1x2x128xf32>,
    return
  }
}

</mosaic_0001>

<llo_original>
// kernel: _forward_impl.1
$region0: #{_forward_impl.1}
  #allocation0 [shape = 'u32[]', space=smem, size = 0x4, offset = 0x4, fixed_abs, tag = 'smem constant byte address 0x4 - core index']
  #allocation1 [shape = 'u32[144,128]{1,0:T(1,128)}', space=vmem, size = 0x12000, scoped, tag = 'internal scratch']
  %s0 = inlined_call_operand.vmem [shape: s32[16,1], index: 0, kind: input, shape index: {}]
  %s1 = inlined_call_operand.vmem [shape: f32[120,32], index: 1, kind: input, shape index: {}]
  %s2 = inlined_call_operand.vmem [shape: f32[3,8,128], index: 2, kind: input, shape index: {}]
  %s3 = inlined_call_operand.vmem [shape: f32[2,32,96], index: 3, kind: input, shape index: {}]
  %s4 = inlined_call_operand.vmem [shape: f32[2,32,32], index: 4, kind: input, shape index: {}]
  %s5 = inlined_call_operand.vmem [shape: f32[2,32,128], index: 5, kind: input, shape index: {}]
  %s6 = inlined_call_operand.vmem [shape: f32[2,128,32], index: 6, kind: input, shape index: {}]
  %s7 = inlined_call_operand.vmem [shape: f32[32,128], index: 7, kind: input, shape index: {}]
  %s8 = inlined_call_operand.hbm [shape: f32[8,2,128], index: 8, kind: output, shape index: {}]
  %s9 = sld [smem:[#allocation0]]
  $region42: #{_forward_impl.1} parent=0
    _
  %s11 = ssub.s32 1, %s9
  %s12 = scalar_select 0, %s11, %s9
  $region1: #{_forward_impl.1} parent=0
    #allocation2 [shape = 'u8[8192]{0}', space=vmem, size = 0x2000, scoped, tag = 'output window, operand 0, single buffered']
    #allocation3 [shape = 's32[1]{0}', space=sflag, size = 0x4, scoped, tag = 'scoped memory for _forward_impl.1']
    %13 = vsyncpa [#allocation3], 0
    // Predicated region
    $region2: #{_forward_impl.1} parent=1 // pred_check
      _
    $region3: #{_forward_impl.1} parent=1 // pred_check_branch
      %15 = sbr.rel (0) target = $region5
    $region4: #{_forward_impl.1} parent=1 // pred_region
      _
    $region5: #{_forward_impl.1} parent=1 // pred_fallthru
      _
    // Predicated region
    $region6: #{_forward_impl.1} parent=1 // pred_check
      _
    $region7: #{_forward_impl.1} parent=1 // pred_check_branch
      %17 = sbr.rel (0) target = $region9
    $region8: #{_forward_impl.1} parent=1 // pred_region
      _
    $region9: #{_forward_impl.1} parent=1 // pred_fallthru
      _
    // Predicated region
    $region10: #{_forward_impl.1} parent=1 // pred_check
      _
    $region11: #{_forward_impl.1} parent=1 // pred_check_branch
      %19 = sbr.rel (0) target = $region13
    $region12: #{_forward_impl.1} parent=1 // pred_region
      _
    $region13: #{_forward_impl.1} parent=1 // pred_fallthru
      _
    // Predicated region
    $region14: #{_forward_impl.1} parent=1 // pred_check
      _
    $region15: #{_forward_impl.1} parent=1 // pred_check_branch
      %21 = sbr.rel (0) target = $region17
    $region16: #{_forward_impl.1} parent=1 // pred_region
      _
    $region17: #{_forward_impl.1} parent=1 // pred_fallthru
      _
    // Predicated region
    $region18: #{_forward_impl.1} parent=1 // pred_check
      _
    $region19: #{_forward_impl.1} parent=1 // pred_check_branch
      %23 = sbr.rel (0) target = $region21
    $region20: #{_forward_impl.1} parent=1 // pred_region
      _
    $region21: #{_forward_impl.1} parent=1 // pred_fallthru
      _
    // Predicated region
    $region22: #{_forward_impl.1} parent=1 // pred_check
      _
    $region23: #{_forward_impl.1} parent=1 // pred_check_branch
      %25 = sbr.rel (0) target = $region25
    $region24: #{_forward_impl.1} parent=1 // pred_region
      _
    $region25: #{_forward_impl.1} parent=1 // pred_fallthru
      _
    // Predicated region
    $region26: #{_forward_impl.1} parent=1 // pred_check
      _
    $region27: #{_forward_impl.1} parent=1 // pred_check_branch
      %27 = sbr.rel (0) target = $region29
    $region28: #{_forward_impl.1} parent=1 // pred_region
      _
    $region29: #{_forward_impl.1} parent=1 // pred_fallthru
      _
    // Predicated region
    $region30: #{_forward_impl.1} parent=1 // pred_check
      _
    $region31: #{_forward_impl.1} parent=1 // pred_check_branch
      %29 = sbr.rel (0) target = $region33
    $region32: #{_forward_impl.1} parent=1 // pred_region
      _
    $region33: #{_forward_impl.1} parent=1 // pred_fallthru
      _
    %v31 = vld [vmem:[%s0] sm:$0xff]
    %v32 = vld [vmem:[%s0 + $0x8] sm:$0xff]
    %v33 = vlaneseq
    %v34 = vand.u32 %v33, 127
    %35 = vset.pattern.permute.xlu0 0
    %36 = vperm.xlu0 %35, %v31
    %v37 = vpop.permute.xlu0 %36
    %38 = vset.pattern.permute.xlu0 0
    %39 = vperm.xlu0 %38, %v32
    %v40 = vpop.permute.xlu0 %39
    %vm41 = vcmp.eq.s32.totalorder %v37, %v34
    %vm42 = vcmp.eq.s32.totalorder %v40, %v34
    %v43 = vsel %vm41, 1, 0
    %v44 = vsel %vm42, 1, 0
    %v45 = vcvt.s32.f32 %v43
    %v46 = vcvt.s32.f32 %v44
    %v47 = vld [vmem:[%s1] sm:$0xff]
    %v48 = vld [vmem:[%s1 + $0x8] sm:$0xff]
    %v49 = vld [vmem:[%s1 + $0x10] sm:$0xff]
    %v50 = vld [vmem:[%s1 + $0x18] sm:$0xff]
    %v51 = vld [vmem:[%s1 + $0x20] sm:$0xff]
    %v52 = vld [vmem:[%s1 + $0x28] sm:$0xff]
    %v53 = vld [vmem:[%s1 + $0x30] sm:$0xff]
    %vm54 = vcmask 457728
    %v56 = vsel %vm54, %v45, 0
    %v59 = vsel %vm54, %v46, 0
    %61 = vmatprep.subr.mxu0 0.0
    %62 = vmatpush1.msra.mxu0 0.0
    %63 = vmatprep.subr.mxu0 0.0
    %64 = vmatpush1.msra.mxu0 0.0
    %65 = vmatprep.subr.mxu0 0.0
    %66 = vmatpush1.msra.mxu0 0.0
    %67 = vmatprep.subr.mxu0 0.0
    %68 = vmatpush1.msra.mxu0 0.0
    %69 = vmatprep.subr.mxu0 0.0
    %70 = vmatpush1.msra.mxu0 0.0
    %71 = vmatprep.subr.mxu0 0.0
    %72 = vmatpush1.msra.mxu0 0.0
    %73 = vmatprep.subr.mxu0 0.0
    %74 = vmatpush1.msra.mxu0 0.0
    %75 = vmatprep.subr.mxu0 0.0
    %76 = vmatpush1.msra.mxu0 0.0
    %77 = vmatprep.subr.mxu0 0.0
    %78 = vmatpush1.msra.mxu0 0.0
    %79 = vmatprep.subr.mxu0 0.0
    %80 = vmatpush1.msra.mxu0 %v53
    %81 = vmatprep.subr.mxu0 0.0
    %82 = vmatpush1.msra.mxu0 %v52
    %83 = vmatprep.subr.mxu0 0.0
    %84 = vmatpush1.msra.mxu0 %v51
    %85 = vmatprep.subr.mxu0 0.0
    %86 = vmatpush1.msra.mxu0 %v50
    %87 = vmatprep.subr.mxu0 0.0
    %88 = vmatpush1.msra.mxu0 %v49
    %89 = vmatprep.subr.mxu0 0.0
    %90 = vmatpush1.msra.mxu0 %v48
    %91 = vmatprep.subr.mxu0 0.0
    %92 = vmatpush1.msra.mxu0 %v47
    %93 = vmatprep.subr.mxu0 0.0
    %94 = vmatpush2.msra.mxu0 0.0
    %95 = vmatprep.subr.mxu0 0.0
    %96 = vmatpush2.msra.mxu0 0.0
    %97 = vmatprep.subr.mxu0 0.0
    %98 = vmatpush2.msra.mxu0 0.0
    %99 = vmatprep.subr.mxu0 0.0
    %100 = vmatpush2.msra.mxu0 0.0
    %101 = vmatprep.subr.mxu0 0.0
    %102 = vmatpush2.msra.mxu0 0.0
    %103 = vmatprep.subr.mxu0 0.0
    %104 = vmatpush2.msra.mxu0 0.0
    %105 = vmatprep.subr.mxu0 0.0
    %106 = vmatpush2.msra.mxu0 0.0
    %107 = vmatprep.subr.mxu0 0.0
    %108 = vmatpush2.msra.mxu0 0.0
    %109 = vmatprep.subr.mxu0 0.0
    %110 = vmatpush2.msra.mxu0 0.0
    %111 = vmatprep.subr.mxu0 0.0
    %112 = vmatpush2.msra.mxu0 0.0
    %113 = vmatprep.subr.mxu0 0.0
    %114 = vmatpush2.msra.mxu0 0.0
    %115 = vmatprep.subr.mxu0 0.0
    %116 = vmatpush2.msra.mxu0 0.0
    %117 = vmatprep.subr.mxu0 0.0
    %118 = vmatpush2.msra.mxu0 0.0
    %119 = vmatprep.subr.mxu0 0.0
    %120 = vmatpush2.msra.mxu0 0.0
    %121 = vmatprep.subr.mxu0 0.0
    %122 = vmatpush2.msra.mxu0 0.0
    %123 = vmatprep.subr.mxu0 0.0
    %124 = vmatpush2.msra.mxu0 0.0
    %125 = vmatprep.mubr.f32.mxu0 0.0
    %126 = vmatmul.mubr.f32.gmra.mxu0 %v56
    %v127 = vpop.f32.mrf.mxu0
    %v128 = vadd.f32 0.0, %v127
    %v129 = vpop.f32.mrf.mxu0
    %130 = vmatprep.mubr.f32.mxu0 0.0
    %131 = vmatmul.mubr.f32.gmra.mxu0 %v59
    %v132 = vpop.f32.mrf.mxu0
    %v133 = vadd.f32 0.0, %v132
    %v134 = vpop.f32.mrf.mxu0
    %135 = vdwg.mxu0
    %v136 = vmul.f32 %v128, 5.656854
    %v137 = vmul.f32 %v133, 5.656854
    %v138 = vld [vmem:[%s1 + $0x38] sm:$0xff]
    %v139 = vadd.f32 %v136, %v138
    %v140 = vadd.f32 %v137, %v138
    %v141 = vlaneseq
    %v142 = vshrl.u32 %v141, 7
    %vm143 = vcmp.le.s32.totalorder %v34, %v142
    %v144 = vsel %vm143, 0.0, -1e+30
    %v145 = vld [vmem:[%s2] sm:$0xff]
    %v146 = vld [vmem:[%s3] sm:$0xff]
    %v147 = vld [vmem:[%s3 + $0x8] sm:$0xff]
    %v148 = vld [vmem:[%s3 + $0x10] sm:$0xff]
    %v149 = vld [vmem:[%s3 + $0x18] sm:$0xff]
    %v150 = vpack.c.bf16 %v147, %v146
    %v151 = vpack.c.bf16 %v149, %v148
    %v152 = vld [vmem:[%s4] sm:$0xff]
    %v153 = vld [vmem:[%s4 + $0x8] sm:$0xff]
    %v154 = vld [vmem:[%s4 + $0x10] sm:$0xff]
    %v155 = vld [vmem:[%s4 + $0x18] sm:$0xff]
    %v156 = vpack.c.bf16 %v153, %v152
    %v157 = vpack.c.bf16 %v155, %v154
    %v158 = vpack.c.bf16 %v140, %v139
    %v159 = vlaneseq
    %v160 = vshrl.u32 %v159, 7
    %v161 = vsub.s32 0, %v160
    %v162 = vrot.slane %v145, %v161
    %vm163 = vcmask 261120
    %v165 = vsel %vm163, %v158, 0
    %167 = vmatprep.subr.bf16.mxu0 0
    %168 = vmatpush1.bf16.msra.mxu0 0
    %169 = vmatprep.subr.bf16.mxu0 0
    %170 = vmatpush1.bf16.msra.mxu0 0
    %171 = vmatprep.subr.bf16.mxu0 0
    %172 = vmatpush1.bf16.msra.mxu0 0
    %173 = vmatprep.subr.bf16.mxu0 0
    %174 = vmatpush1.bf16.msra.mxu0 0
    %175 = vmatprep.subr.bf16.mxu0 0
    %176 = vmatpush1.bf16.msra.mxu0 0
    %177 = vmatprep.subr.bf16.mxu0 0
    %178 = vmatpush1.bf16.msra.mxu0 0
    %179 = vmatprep.subr.bf16.mxu0 0
    %180 = vmatpush1.bf16.msra.mxu0 %v151
    %181 = vmatprep.subr.bf16.mxu0 0
    %182 = vmatpush1.bf16.msra.mxu0 %v150
    %183 = vmatprep.subr.bf16.mxu0 0
    %184 = vmatpush2.bf16.msra.mxu0 0
    %185 = vmatprep.subr.bf16.mxu0 0
    %186 = vmatpush2.bf16.msra.mxu0 0
    %187 = vmatprep.subr.bf16.mxu0 0
    %188 = vmatpush2.bf16.msra.mxu0 0
    %189 = vmatprep.subr.bf16.mxu0 0
    %190 = vmatpush2.bf16.msra.mxu0 0
    %191 = vmatprep.subr.bf16.mxu0 0
    %192 = vmatpush2.bf16.msra.mxu0 0
    %193 = vmatprep.subr.bf16.mxu0 0
    %194 = vmatpush2.bf16.msra.mxu0 0
    %195 = vmatprep.subr.bf16.mxu0 0
    %196 = vmatpush2.bf16.msra.mxu0 0
    %197 = vmatprep.subr.bf16.mxu0 0
    %198 = vmatpush2.bf16.msra.mxu0 0
    %199 = vmatprep.mubr.bf16.mxu0 0
    %200 = vmatmul.mubr.bf16.gmra.mxu0 %v165
    %v201 = vpop.f32.mrf.mxu0
    %v202 = vadd.f32 %v162, %v201
    %v203 = vpop.f32.mrf.mxu0
    %v204 = vpop.f32.mrf.mxu0
    %v205 = vadd.f32 %v162, %v204
    %v206 = vpop.f32.mrf.mxu0
    %207 = vdwg.mxu0
    %v208 = vmul.f32 %v202, 0.25
    %v209 = vmul.f32 %v205, 0.25
    %v210 = vpack.c.bf16 %v208, %v208
    %v211 = vpack.c.bf16 %v209, %v209
    %v212 = vpack.c.bf16 %v202, %v202
    %v213 = vpack.c.bf16 %v205, %v205
    %215 = vrot.lane.b32.xlu0 %v212, 96
    %v216 = vpop.permute.xlu0 %215
    %vm217 = vcmask 130048
    %v219 = vsel %vm217, %v210, 0
    %v222 = vsel %vm217, %v216, 0
    %224 = vmatprep.subr.bf16.mxu0 0
    %225 = vmatpush1.bf16.xpose.msra.mxu0 0
    %226 = vmatprep.subr.bf16.mxu0 0
    %227 = vmatpush1.bf16.xpose.msra.mxu0 0
    %228 = vmatprep.subr.bf16.mxu0 0
    %229 = vmatpush1.bf16.xpose.msra.mxu0 0
    %230 = vmatprep.subr.bf16.mxu0 0
    %231 = vmatpush1.bf16.xpose.msra.mxu0 0
    %232 = vmatprep.subr.bf16.mxu0 0
    %233 = vmatpush1.bf16.xpose.msra.mxu0 0
    %234 = vmatprep.subr.bf16.mxu0 0
    %235 = vmatpush1.bf16.xpose.msra.mxu0 0
    %236 = vmatprep.subr.bf16.mxu0 0
    %237 = vmatpush1.bf16.xpose.msra.mxu0 0
    %238 = vmatprep.subr.bf16.mxu0 0
    %239 = vmatpush1.bf16.xpose.msra.mxu0 %v222
    %240 = vmatprep.subr.bf16.mxu0 0
    %241 = vmatpush2.bf16.xpose.msra.mxu0 0
    %242 = vmatprep.subr.bf16.mxu0 0
    %243 = vmatpush2.bf16.xpose.msra.mxu0 0
    %244 = vmatprep.subr.bf16.mxu0 0
    %245 = vmatpush2.bf16.xpose.msra.mxu0 0
    %246 = vmatprep.subr.bf16.mxu0 0
    %247 = vmatpush2.bf16.xpose.msra.mxu0 0
    %248 = vmatprep.subr.bf16.mxu0 0
    %249 = vmatpush2.bf16.xpose.msra.mxu0 0
    %250 = vmatprep.subr.bf16.mxu0 0
    %251 = vmatpush2.bf16.xpose.msra.mxu0 0
    %252 = vmatprep.subr.bf16.mxu0 0
    %253 = vmatpush2.bf16.xpose.msra.mxu0 0
    %254 = vmatprep.subr.bf16.mxu0 0
    %255 = vmatpush2.bf16.xpose.msra.mxu0 0
    %256 = vmatprep.mubr.bf16.mxu0 0
    %257 = vmatmul.mubr.bf16.gmra.mxu0 %v219
    %v258 = vpop.f32.mrf.mxu0
    %v259 = vadd.f32 %v144, %v258
    %v260 = vpop.f32.mrf.mxu0
    %v261 = vpop.f32.mrf.mxu0
    %v262 = vpop.f32.mrf.mxu0
    %263 = vdwg.mxu0
    %265 = vrot.lane.b32.xlu0 %v213, 96
    %v266 = vpop.permute.xlu0 %265
    %v268 = vsel %vm217, %v211, 0
    %v271 = vsel %vm217, %v266, 0
    %273 = vmatprep.subr.bf16.mxu0 0
    %274 = vmatpush1.bf16.xpose.msra.mxu0 0
    %275 = vmatprep.subr.bf16.mxu0 0
    %276 = vmatpush1.bf16.xpose.msra.mxu0 0
    %277 = vmatprep.subr.bf16.mxu0 0
    %278 = vmatpush1.bf16.xpose.msra.mxu0 0
    %279 = vmatprep.subr.bf16.mxu0 0
    %280 = vmatpush1.bf16.xpose.msra.mxu0 0
    %281 = vmatprep.subr.bf16.mxu0 0
    %282 = vmatpush1.bf16.xpose.msra.mxu0 0
    %283 = vmatprep.subr.bf16.mxu0 0
    %284 = vmatpush1.bf16.xpose.msra.mxu0 0
    %285 = vmatprep.subr.bf16.mxu0 0
    %286 = vmatpush1.bf16.xpose.msra.mxu0 0
    %287 = vmatprep.subr.bf16.mxu0 0
    %288 = vmatpush1.bf16.xpose.msra.mxu0 %v271
    %289 = vmatprep.subr.bf16.mxu0 0
    %290 = vmatpush2.bf16.xpose.msra.mxu0 0
    %291 = vmatprep.subr.bf16.mxu0 0
    %292 = vmatpush2.bf16.xpose.msra.mxu0 0
    %293 = vmatprep.subr.bf16.mxu0 0
    %294 = vmatpush2.bf16.xpose.msra.mxu0 0
    %295 = vmatprep.subr.bf16.mxu0 0
    %296 = vmatpush2.bf16.xpose.msra.mxu0 0
    %297 = vmatprep.subr.bf16.mxu0 0
    %298 = vmatpush2.bf16.xpose.msra.mxu0 0
    %299 = vmatprep.subr.bf16.mxu0 0
    %300 = vmatpush2.bf16.xpose.msra.mxu0 0
    %301 = vmatprep.subr.bf16.mxu0 0
    %302 = vmatpush2.bf16.xpose.msra.mxu0 0
    %303 = vmatprep.subr.bf16.mxu0 0
    %304 = vmatpush2.bf16.xpose.msra.mxu0 0
    %305 = vmatprep.mubr.bf16.mxu0 0
    %306 = vmatmul.mubr.bf16.gmra.mxu0 %v268
    %v307 = vpop.f32.mrf.mxu0
    %v308 = vadd.f32 %v144, %v307
    %v309 = vpop.f32.mrf.mxu0
    %v310 = vpop.f32.mrf.mxu0
    %v311 = vpop.f32.mrf.mxu0
    %312 = vdwg.mxu0
    %vm313 = vcmask 64512
    %v314 = vsel %vm313, %v259, -inf
    %315 = vmax.xlane.f32.xlu0 %v314
    %v316 = vpop.xlane.xlu0 %315
    %v317 = vsel %vm313, %v308, -inf
    %318 = vmax.xlane.f32.xlu0 %v317
    %v319 = vpop.xlane.xlu0 %318
    %v320 = vsub.f32 %v259, %v316
    %v321 = vsub.f32 %v308, %v319
    %v322 = vmul.f32 %v320, 1.442695
    %v323 = vpow.pop %v322
    %v324 = vmul.f32 %v321, 1.442695
    %v325 = vpow.pop %v324
    %v326 = vsel %vm313, %v323, 0.0
    %327 = vadd.xlane.f32.xlu0 %v326
    %v328 = vpop.xlane.xlu0 %327
    %v329 = vsel %vm313, %v325, 0.0
    %330 = vadd.xlane.f32.xlu0 %v329
    %v331 = vpop.xlane.xlu0 %330
    %v332 = vrcp.pop %v328
    %v333 = vrcp.pop %v331
    %v334 = vmul.f32 %v323, %v332
    %v335 = vmul.f32 %v325, %v333
    %v336 = vpack.c.bf16 %v334, %v334
    %v337 = vpack.c.bf16 %v335, %v335
    %338 = vrot.lane.b32.xlu0 %v212, 64
    %v339 = vpop.permute.xlu0 %338
    %v341 = vsel %vm313, %v336, 0
    %vm343 = vcmask 1043456
    %v345 = vsel %vm343, %v339, 0
    %347 = vmatprep.subr.bf16.mxu0 0
    %348 = vmatpush1.bf16.msra.mxu0 0
    %349 = vmatprep.subr.bf16.mxu0 0
    %350 = vmatpush1.bf16.msra.mxu0 0
    %351 = vmatprep.subr.bf16.mxu0 0
    %352 = vmatpush1.bf16.msra.mxu0 0
    %353 = vmatprep.subr.bf16.mxu0 0
    %354 = vmatpush1.bf16.msra.mxu0 0
    %355 = vmatprep.subr.bf16.mxu0 0
    %356 = vmatpush1.bf16.msra.mxu0 0
    %357 = vmatprep.subr.bf16.mxu0 0
    %358 = vmatpush1.bf16.msra.mxu0 0
    %359 = vmatprep.subr.bf16.mxu0 0
    %360 = vmatpush1.bf16.msra.mxu0 0
    %361 = vmatprep.subr.bf16.mxu0 0
    %362 = vmatpush1.bf16.msra.mxu0 %v345
    %363 = vmatprep.subr.bf16.mxu0 0
    %364 = vmatpush2.bf16.msra.mxu0 0
    %365 = vmatprep.subr.bf16.mxu0 0
    %366 = vmatpush2.bf16.msra.mxu0 0
    %367 = vmatprep.subr.bf16.mxu0 0
    %368 = vmatpush2.bf16.msra.mxu0 0
    %369 = vmatprep.subr.bf16.mxu0 0
    %370 = vmatpush2.bf16.msra.mxu0 0
    %371 = vmatprep.subr.bf16.mxu0 0
    %372 = vmatpush2.bf16.msra.mxu0 0
    %373 = vmatprep.subr.bf16.mxu0 0
    %374 = vmatpush2.bf16.msra.mxu0 0
    %375 = vmatprep.subr.bf16.mxu0 0
    %376 = vmatpush2.bf16.msra.mxu0 0
    %377 = vmatprep.subr.bf16.mxu0 0
    %378 = vmatpush2.bf16.msra.mxu0 0
    %379 = vmatprep.mubr.bf16.mxu0 0
    %380 = vmatmul.mubr.bf16.gmra.mxu0 %v341
    %v381 = vpop.f32.mrf.mxu0
    %v382 = vadd.f32 0.0, %v381
    %v383 = vpop.f32.mrf.mxu0
    %v384 = vpop.f32.mrf.mxu0
    %v385 = vpop.f32.mrf.mxu0
    %386 = vdwg.mxu0
    %387 = vrot.lane.b32.xlu0 %v213, 64
    %v388 = vpop.permute.xlu0 %387
    %v390 = vsel %vm313, %v337, 0
    %v393 = vsel %vm343, %v388, 0
    %395 = vmatprep.subr.bf16.mxu0 0
    %396 = vmatpush1.bf16.msra.mxu0 0
    %397 = vmatprep.subr.bf16.mxu0 0
    %398 = vmatpush1.bf16.msra.mxu0 0
    %399 = vmatprep.subr.bf16.mxu0 0
    %400 = vmatpush1.bf16.msra.mxu0 0
    %401 = vmatprep.subr.bf16.mxu0 0
    %402 = vmatpush1.bf16.msra.mxu0 0
    %403 = vmatprep.subr.bf16.mxu0 0
    %404 = vmatpush1.bf16.msra.mxu0 0
    %405 = vmatprep.subr.bf16.mxu0 0
    %406 = vmatpush1.bf16.msra.mxu0 0
    %407 = vmatprep.subr.bf16.mxu0 0
    %408 = vmatpush1.bf16.msra.mxu0 0
    %409 = vmatprep.subr.bf16.mxu0 0
    %410 = vmatpush1.bf16.msra.mxu0 %v393
    %411 = vmatprep.subr.bf16.mxu0 0
    %412 = vmatpush2.bf16.msra.mxu0 0
    %413 = vmatprep.subr.bf16.mxu0 0
    %414 = vmatpush2.bf16.msra.mxu0 0
    %415 = vmatprep.subr.bf16.mxu0 0
    %416 = vmatpush2.bf16.msra.mxu0 0
    %417 = vmatprep.subr.bf16.mxu0 0
    %418 = vmatpush2.bf16.msra.mxu0 0
    %419 = vmatprep.subr.bf16.mxu0 0
    %420 = vmatpush2.bf16.msra.mxu0 0
    %421 = vmatprep.subr.bf16.mxu0 0
    %422 = vmatpush2.bf16.msra.mxu0 0
    %423 = vmatprep.subr.bf16.mxu0 0
    %424 = vmatpush2.bf16.msra.mxu0 0
    %425 = vmatprep.subr.bf16.mxu0 0
    %426 = vmatpush2.bf16.msra.mxu0 0
    %427 = vmatprep.mubr.bf16.mxu0 0
    %428 = vmatmul.mubr.bf16.gmra.mxu0 %v390
    %v429 = vpop.f32.mrf.mxu0
    %v430 = vadd.f32 0.0, %v429
    %v431 = vpop.f32.mrf.mxu0
    %v432 = vpop.f32.mrf.mxu0
    %v433 = vpop.f32.mrf.mxu0
    %434 = vdwg.mxu0
    %v435 = vpack.c.bf16 %v430, %v382
    %437 = vrot.lane.b32.xlu0 %v210, 112
    %v438 = vpop.permute.xlu0 %437
    %439 = vrot.lane.b32.xlu0 %v212, 80
    %v440 = vpop.permute.xlu0 %439
    %v442 = vsel %vm217, %v438, 0
    %v445 = vsel %vm217, %v440, 0
    %447 = vmatprep.subr.bf16.mxu0 0
    %448 = vmatpush1.bf16.xpose.msra.mxu0 0
    %449 = vmatprep.subr.bf16.mxu0 0
    %450 = vmatpush1.bf16.xpose.msra.mxu0 0
    %451 = vmatprep.subr.bf16.mxu0 0
    %452 = vmatpush1.bf16.xpose.msra.mxu0 0
    %453 = vmatprep.subr.bf16.mxu0 0
    %454 = vmatpush1.bf16.xpose.msra.mxu0 0
    %455 = vmatprep.subr.bf16.mxu0 0
    %456 = vmatpush1.bf16.xpose.msra.mxu0 0
    %457 = vmatprep.subr.bf16.mxu0 0
    %458 = vmatpush1.bf16.xpose.msra.mxu0 0
    %459 = vmatprep.subr.bf16.mxu0 0
    %460 = vmatpush1.bf16.xpose.msra.mxu0 0
    %461 = vmatprep.subr.bf16.mxu0 0
    %462 = vmatpush1.bf16.xpose.msra.mxu0 %v445
    %463 = vmatprep.subr.bf16.mxu0 0
    %464 = vmatpush2.bf16.xpose.msra.mxu0 0
    %465 = vmatprep.subr.bf16.mxu0 0
    %466 = vmatpush2.bf16.xpose.msra.mxu0 0
    %467 = vmatprep.subr.bf16.mxu0 0
    %468 = vmatpush2.bf16.xpose.msra.mxu0 0
    %469 = vmatprep.subr.bf16.mxu0 0
    %470 = vmatpush2.bf16.xpose.msra.mxu0 0
    %471 = vmatprep.subr.bf16.mxu0 0
    %472 = vmatpush2.bf16.xpose.msra.mxu0 0
    %473 = vmatprep.subr.bf16.mxu0 0
    %474 = vmatpush2.bf16.xpose.msra.mxu0 0
    %475 = vmatprep.subr.bf16.mxu0 0
    %476 = vmatpush2.bf16.xpose.msra.mxu0 0
    %477 = vmatprep.subr.bf16.mxu0 0
    %478 = vmatpush2.bf16.xpose.msra.mxu0 0
    %479 = vmatprep.mubr.bf16.mxu0 0
    %480 = vmatmul.mubr.bf16.gmra.mxu0 %v442
    %v481 = vpop.f32.mrf.mxu0
    %v482 = vadd.f32 %v144, %v481
    %v483 = vpop.f32.mrf.mxu0
    %v484 = vpop.f32.mrf.mxu0
    %v485 = vpop.f32.mrf.mxu0
    %486 = vdwg.mxu0
    %488 = vrot.lane.b32.xlu0 %v211, 112
    %v489 = vpop.permute.xlu0 %488
    %490 = vrot.lane.b32.xlu0 %v213, 80
    %v491 = vpop.permute.xlu0 %490
    %v493 = vsel %vm217, %v489, 0
    %v496 = vsel %vm217, %v491, 0
    %498 = vmatprep.subr.bf16.mxu0 0
    %499 = vmatpush1.bf16.xpose.msra.mxu0 0
    %500 = vmatprep.subr.bf16.mxu0 0
    %501 = vmatpush1.bf16.xpose.msra.mxu0 0
    %502 = vmatprep.subr.bf16.mxu0 0
    %503 = vmatpush1.bf16.xpose.msra.mxu0 0
    %504 = vmatprep.subr.bf16.mxu0 0
    %505 = vmatpush1.bf16.xpose.msra.mxu0 0
    %506 = vmatprep.subr.bf16.mxu0 0
    %507 = vmatpush1.bf16.xpose.msra.mxu0 0
    %508 = vmatprep.subr.bf16.mxu0 0
    %509 = vmatpush1.bf16.xpose.msra.mxu0 0
    %510 = vmatprep.subr.bf16.mxu0 0
    %511 = vmatpush1.bf16.xpose.msra.mxu0 0
    %512 = vmatprep.subr.bf16.mxu0 0
    %513 = vmatpush1.bf16.xpose.msra.mxu0 %v496
    %514 = vmatprep.subr.bf16.mxu0 0
    %515 = vmatpush2.bf16.xpose.msra.mxu0 0
    %516 = vmatprep.subr.bf16.mxu0 0
    %517 = vmatpush2.bf16.xpose.msra.mxu0 0
    %518 = vmatprep.subr.bf16.mxu0 0
    %519 = vmatpush2.bf16.xpose.msra.mxu0 0
    %520 = vmatprep.subr.bf16.mxu0 0
    %521 = vmatpush2.bf16.xpose.msra.mxu0 0
    %522 = vmatprep.subr.bf16.mxu0 0
    %523 = vmatpush2.bf16.xpose.msra.mxu0 0
    %524 = vmatprep.subr.bf16.mxu0 0
    %525 = vmatpush2.bf16.xpose.msra.mxu0 0
    %526 = vmatprep.subr.bf16.mxu0 0
    %527 = vmatpush2.bf16.xpose.msra.mxu0 0
    %528 = vmatprep.subr.bf16.mxu0 0
    %529 = vmatpush2.bf16.xpose.msra.mxu0 0
    %530 = vmatprep.mubr.bf16.mxu0 0
    %531 = vmatmul.mubr.bf16.gmra.mxu0 %v493
    %v532 = vpop.f32.mrf.mxu0
    %v533 = vadd.f32 %v144, %v532
    %v534 = vpop.f32.mrf.mxu0
    %v535 = vpop.f32.mrf.mxu0
    %v536 = vpop.f32.mrf.mxu0
    %537 = vdwg.mxu0
    %v538 = vsel %vm313, %v482, -inf
    %539 = vmax.xlane.f32.xlu0 %v538
    %v540 = vpop.xlane.xlu0 %539
    %v541 = vsel %vm313, %v533, -inf
    %542 = vmax.xlane.f32.xlu0 %v541
    %v543 = vpop.xlane.xlu0 %542
    %v544 = vsub.f32 %v482, %v540
    %v545 = vsub.f32 %v533, %v543
    %v546 = vmul.f32 %v544, 1.442695
    %v547 = vpow.pop %v546
    %v548 = vmul.f32 %v545, 1.442695
    %v549 = vpow.pop %v548
    %v550 = vsel %vm313, %v547, 0.0
    %551 = vadd.xlane.f32.xlu0 %v550
    %v552 = vpop.xlane.xlu0 %551
    %v553 = vsel %vm313, %v549, 0.0
    %554 = vadd.xlane.f32.xlu0 %v553
    %v555 = vpop.xlane.xlu0 %554
    %v556 = vrcp.pop %v552
    %v557 = vrcp.pop %v555
    %v558 = vmul.f32 %v547, %v556
    %v559 = vmul.f32 %v549, %v557
    %v560 = vpack.c.bf16 %v558, %v558
    %v561 = vpack.c.bf16 %v559, %v559
    %562 = vrot.lane.b32.xlu0 %v212, 48
    %v563 = vpop.permute.xlu0 %562
    %v565 = vsel %vm313, %v560, 0
    %v568 = vsel %vm343, %v563, 0
    %570 = vmatprep.subr.bf16.mxu0 0
    %571 = vmatpush1.bf16.msra.mxu0 0
    %572 = vmatprep.subr.bf16.mxu0 0
    %573 = vmatpush1.bf16.msra.mxu0 0
    %574 = vmatprep.subr.bf16.mxu0 0
    %575 = vmatpush1.bf16.msra.mxu0 0
    %576 = vmatprep.subr.bf16.mxu0 0
    %577 = vmatpush1.bf16.msra.mxu0 0
    %578 = vmatprep.subr.bf16.mxu0 0
    %579 = vmatpush1.bf16.msra.mxu0 0
    %580 = vmatprep.subr.bf16.mxu0 0
    %581 = vmatpush1.bf16.msra.mxu0 0
    %582 = vmatprep.subr.bf16.mxu0 0
    %583 = vmatpush1.bf16.msra.mxu0 0
    %584 = vmatprep.subr.bf16.mxu0 0
    %585 = vmatpush1.bf16.msra.mxu0 %v568
    %586 = vmatprep.subr.bf16.mxu0 0
    %587 = vmatpush2.bf16.msra.mxu0 0
    %588 = vmatprep.subr.bf16.mxu0 0
    %589 = vmatpush2.bf16.msra.mxu0 0
    %590 = vmatprep.subr.bf16.mxu0 0
    %591 = vmatpush2.bf16.msra.mxu0 0
    %592 = vmatprep.subr.bf16.mxu0 0
    %593 = vmatpush2.bf16.msra.mxu0 0
    %594 = vmatprep.subr.bf16.mxu0 0
    %595 = vmatpush2.bf16.msra.mxu0 0
    %596 = vmatprep.subr.bf16.mxu0 0
    %597 = vmatpush2.bf16.msra.mxu0 0
    %598 = vmatprep.subr.bf16.mxu0 0
    %599 = vmatpush2.bf16.msra.mxu0 0
    %600 = vmatprep.subr.bf16.mxu0 0
    %601 = vmatpush2.bf16.msra.mxu0 0
    %602 = vmatprep.mubr.bf16.mxu0 0
    %603 = vmatmul.mubr.bf16.gmra.mxu0 %v565
    %v604 = vpop.f32.mrf.mxu0
    %v605 = vadd.f32 0.0, %v604
    %v606 = vpop.f32.mrf.mxu0
    %v607 = vpop.f32.mrf.mxu0
    %v608 = vpop.f32.mrf.mxu0
    %609 = vdwg.mxu0
    %610 = vrot.lane.b32.xlu0 %v213, 48
    %v611 = vpop.permute.xlu0 %610
    %v613 = vsel %vm313, %v561, 0
    %v616 = vsel %vm343, %v611, 0
    %618 = vmatprep.subr.bf16.mxu0 0
    %619 = vmatpush1.bf16.msra.mxu0 0
    %620 = vmatprep.subr.bf16.mxu0 0
    %621 = vmatpush1.bf16.msra.mxu0 0
    %622 = vmatprep.subr.bf16.mxu0 0
    %623 = vmatpush1.bf16.msra.mxu0 0
    %624 = vmatprep.subr.bf16.mxu0 0
    %625 = vmatpush1.bf16.msra.mxu0 0
    %626 = vmatprep.subr.bf16.mxu0 0
    %627 = vmatpush1.bf16.msra.mxu0 0
    %628 = vmatprep.subr.bf16.mxu0 0
    %629 = vmatpush1.bf16.msra.mxu0 0
    %630 = vmatprep.subr.bf16.mxu0 0
    %631 = vmatpush1.bf16.msra.mxu0 0
    %632 = vmatprep.subr.bf16.mxu0 0
    %633 = vmatpush1.bf16.msra.mxu0 %v616
    %634 = vmatprep.subr.bf16.mxu0 0
    %635 = vmatpush2.bf16.msra.mxu0 0
    %636 = vmatprep.subr.bf16.mxu0 0
    %637 = vmatpush2.bf16.msra.mxu0 0
    %638 = vmatprep.subr.bf16.mxu0 0
    %639 = vmatpush2.bf16.msra.mxu0 0
    %640 = vmatprep.subr.bf16.mxu0 0
    %641 = vmatpush2.bf16.msra.mxu0 0
    %642 = vmatprep.subr.bf16.mxu0 0
    %643 = vmatpush2.bf16.msra.mxu0 0
    %644 = vmatprep.subr.bf16.mxu0 0
    %645 = vmatpush2.bf16.msra.mxu0 0
    %646 = vmatprep.subr.bf16.mxu0 0
    %647 = vmatpush2.bf16.msra.mxu0 0
    %648 = vmatprep.subr.bf16.mxu0 0
    %649 = vmatpush2.bf16.msra.mxu0 0
    %650 = vmatprep.mubr.bf16.mxu0 0
    %651 = vmatmul.mubr.bf16.gmra.mxu0 %v613
    %v652 = vpop.f32.mrf.mxu0
    %v653 = vadd.f32 0.0, %v652
    %v654 = vpop.f32.mrf.mxu0
    %v655 = vpop.f32.mrf.mxu0
    %v656 = vpop.f32.mrf.mxu0
    %657 = vdwg.mxu0
    %v658 = vpack.c.bf16 %v653, %v605
    %v660 = vsel %vm217, %v658, 0
    %662 = vmatprep.subr.bf16.mxu0 0
    %663 = vmatpush1.bf16.msra.mxu0 0
    %664 = vmatprep.subr.bf16.mxu0 0
    %665 = vmatpush1.bf16.msra.mxu0 0
    %666 = vmatprep.subr.bf16.mxu0 0
    %667 = vmatpush1.bf16.msra.mxu0 0
    %668 = vmatprep.subr.bf16.mxu0 0
    %669 = vmatpush1.bf16.msra.mxu0 0
    %670 = vmatprep.subr.bf16.mxu0 0
    %671 = vmatpush1.bf16.msra.mxu0 0
    %672 = vmatprep.subr.bf16.mxu0 0
    %673 = vmatpush1.bf16.msra.mxu0 0
    %674 = vmatprep.subr.bf16.mxu0 0
    %675 = vmatpush1.bf16.msra.mxu0 0
    %676 = vmatprep.subr.bf16.mxu0 0
    %677 = vmatpush1.bf16.msra.mxu0 %v157
    %678 = vmatprep.subr.bf16.mxu0 0
    %679 = vmatpush2.bf16.msra.mxu0 0
    %680 = vmatprep.subr.bf16.mxu0 0
    %681 = vmatpush2.bf16.msra.mxu0 0
    %682 = vmatprep.subr.bf16.mxu0 0
    %683 = vmatpush2.bf16.msra.mxu0 0
    %684 = vmatprep.subr.bf16.mxu0 0
    %685 = vmatpush2.bf16.msra.mxu0 0
    %686 = vmatprep.subr.bf16.mxu0 0
    %687 = vmatpush2.bf16.msra.mxu0 0
    %688 = vmatprep.subr.bf16.mxu0 0
    %689 = vmatpush2.bf16.msra.mxu0 0
    %690 = vmatprep.subr.bf16.mxu0 0
    %691 = vmatpush2.bf16.msra.mxu0 0
    %692 = vmatprep.subr.bf16.mxu0 0
    %693 = vmatpush2.bf16.msra.mxu0 0
    %694 = vmatprep.mubr.bf16.mxu0 0
    %695 = vmatmul.mubr.bf16.gmra.mxu0 %v660
    %v696 = vpop.f32.mrf.mxu0
    %v697 = vadd.f32 0.0, %v696
    %v698 = vpop.f32.mrf.mxu0
    %v699 = vpop.f32.mrf.mxu0
    %v700 = vadd.f32 0.0, %v699
    %v701 = vpop.f32.mrf.mxu0
    %702 = vdwg.mxu0
    %v704 = vsel %vm217, %v435, 0
    %706 = vmatprep.subr.bf16.mxu0 0
    %707 = vmatpush1.bf16.msra.mxu0 0
    %708 = vmatprep.subr.bf16.mxu0 0
    %709 = vmatpush1.bf16.msra.mxu0 0
    %710 = vmatprep.subr.bf16.mxu0 0
    %711 = vmatpush1.bf16.msra.mxu0 0
    %712 = vmatprep.subr.bf16.mxu0 0
    %713 = vmatpush1.bf16.msra.mxu0 0
    %714 = vmatprep.subr.bf16.mxu0 0
    %715 = vmatpush1.bf16.msra.mxu0 0
    %716 = vmatprep.subr.bf16.mxu0 0
    %717 = vmatpush1.bf16.msra.mxu0 0
    %718 = vmatprep.subr.bf16.mxu0 0
    %719 = vmatpush1.bf16.msra.mxu0 0
    %720 = vmatprep.subr.bf16.mxu0 0
    %721 = vmatpush1.bf16.msra.mxu0 %v156
    %722 = vmatprep.subr.bf16.mxu0 0
    %723 = vmatpush2.bf16.msra.mxu0 0
    %724 = vmatprep.subr.bf16.mxu0 0
    %725 = vmatpush2.bf16.msra.mxu0 0
    %726 = vmatprep.subr.bf16.mxu0 0
    %727 = vmatpush2.bf16.msra.mxu0 0
    %728 = vmatprep.subr.bf16.mxu0 0
    %729 = vmatpush2.bf16.msra.mxu0 0
    %730 = vmatprep.subr.bf16.mxu0 0
    %731 = vmatpush2.bf16.msra.mxu0 0
    %732 = vmatprep.subr.bf16.mxu0 0
    %733 = vmatpush2.bf16.msra.mxu0 0
    %734 = vmatprep.subr.bf16.mxu0 0
    %735 = vmatpush2.bf16.msra.mxu0 0
    %736 = vmatprep.subr.bf16.mxu0 0
    %737 = vmatpush2.bf16.msra.mxu0 0
    %738 = vmatprep.mubr.bf16.mxu0 0
    %739 = vmatmul.mubr.bf16.gmra.mxu0 %v704
    %v740 = vpop.f32.mrf.mxu0
    %v741 = vadd.f32 %v697, %v740
    %v742 = vpop.f32.mrf.mxu0
    %v743 = vpop.f32.mrf.mxu0
    %v744 = vadd.f32 %v700, %v743
    %v745 = vpop.f32.mrf.mxu0
    %746 = vdwg.mxu0
    %v747 = vlaneseq
    %v748 = vshrl.u32 %v747, 7
    %v749 = vsub.s32 1, %v748
    %v750 = vrot.slane %v145, %v749
    %v751 = vadd.f32 %v741, %v750
    %v752 = vadd.f32 %v744, %v750
    %v753 = vadd.f32 %v139, %v751
    %v754 = vadd.f32 %v140, %v752
    %v755 = vsel %vm163, %v753, 0.0
    %756 = vadd.xlane.f32.xlu0 %v755
    %v757 = vpop.xlane.xlu0 %756
    %v758 = vsel %vm163, %v754, 0.0
    %759 = vadd.xlane.f32.xlu0 %v758
    %v760 = vpop.xlane.xlu0 %759
    %v761 = vrcp.pop 32.0
    %v762 = vmul.f32 %v757, %v761
    %v763 = vmul.f32 %v760, %v761
    %v764 = vsub.f32 %v753, %v762
    %v765 = vsub.f32 %v754, %v763
    %v766 = vmul.f32 %v764, %v764
    %v767 = vmul.f32 %v765, %v765
    %v768 = vsel %vm163, %v766, 0.0
    %769 = vadd.xlane.f32.xlu0 %v768
    %v770 = vpop.xlane.xlu0 %769
    %v771 = vsel %vm163, %v767, 0.0
    %772 = vadd.xlane.f32.xlu0 %v771
    %v773 = vpop.xlane.xlu0 %772
    %v774 = vmul.f32 %v770, %v761
    %v775 = vmul.f32 %v773, %v761
    %v776 = vadd.f32 %v774, 1e-05
    %v777 = vadd.f32 %v775, 1e-05
    %v778 = vrsqrt.pop %v776
    %v779 = vrsqrt.pop %v777
    %v780 = vmul.f32 %v764, %v778
    %v781 = vmul.f32 %v765, %v779
    %v782 = vlaneseq
    %v783 = vshrl.u32 %v782, 7
    %v784 = vsub.s32 2, %v783
    %v785 = vrot.slane %v145, %v784
    %v786 = vmul.f32 %v780, %v785
    %v787 = vmul.f32 %v781, %v785
    %v788 = vlaneseq
    %v789 = vshrl.u32 %v788, 7
    %v790 = vsub.s32 3, %v789
    %v791 = vrot.slane %v145, %v790
    %v792 = vadd.f32 %v786, %v791
    %v793 = vadd.f32 %v787, %v791
    %v794 = vpack.c.bf16 %v793, %v792
    %v795 = vld [vmem:[%s5] sm:$0xff]
    %v796 = vld [vmem:[%s5 + $0x8] sm:$0xff]
    %v797 = vld [vmem:[%s5 + $0x10] sm:$0xff]
    %v798 = vld [vmem:[%s5 + $0x18] sm:$0xff]
    %v799 = vpack.c.bf16 %v796, %v795
    %v800 = vpack.c.bf16 %v798, %v797
    %v801 = vlaneseq
    %v802 = vshrl.u32 %v801, 7
    %v803 = vsub.s32 6, %v802
    %v804 = vrot.slane %v145, %v803
    %v806 = vsel %vm163, %v794, 0
    %808 = vmatprep.subr.bf16.mxu0 0
    %809 = vmatpush1.bf16.msra.mxu0 0
    %810 = vmatprep.subr.bf16.mxu0 0
    %811 = vmatpush1.bf16.msra.mxu0 0
    %812 = vmatprep.subr.bf16.mxu0 0
    %813 = vmatpush1.bf16.msra.mxu0 0
    %814 = vmatprep.subr.bf16.mxu0 0
    %815 = vmatpush1.bf16.msra.mxu0 0
    %816 = vmatprep.subr.bf16.mxu0 0
    %817 = vmatpush1.bf16.msra.mxu0 0
    %818 = vmatprep.subr.bf16.mxu0 0
    %819 = vmatpush1.bf16.msra.mxu0 0
    %820 = vmatprep.subr.bf16.mxu0 0
    %821 = vmatpush1.bf16.msra.mxu0 %v800
    %822 = vmatprep.subr.bf16.mxu0 0
    %823 = vmatpush1.bf16.msra.mxu0 %v799
    %824 = vmatprep.subr.bf16.mxu0 0
    %825 = vmatpush2.bf16.msra.mxu0 0
    %826 = vmatprep.subr.bf16.mxu0 0
    %827 = vmatpush2.bf16.msra.mxu0 0
    %828 = vmatprep.subr.bf16.mxu0 0
    %829 = vmatpush2.bf16.msra.mxu0 0
    %830 = vmatprep.subr.bf16.mxu0 0
    %831 = vmatpush2.bf16.msra.mxu0 0
    %832 = vmatprep.subr.bf16.mxu0 0
    %833 = vmatpush2.bf16.msra.mxu0 0
    %834 = vmatprep.subr.bf16.mxu0 0
    %835 = vmatpush2.bf16.msra.mxu0 0
    %836 = vmatprep.subr.bf16.mxu0 0
    %837 = vmatpush2.bf16.msra.mxu0 0
    %838 = vmatprep.subr.bf16.mxu0 0
    %839 = vmatpush2.bf16.msra.mxu0 0
    %840 = vmatprep.mubr.bf16.mxu0 0
    %841 = vmatmul.mubr.bf16.gmra.mxu0 %v806
    %v842 = vpop.f32.mrf.mxu0
    %v843 = vadd.f32 %v804, %v842
    %v844 = vpop.f32.mrf.mxu0
    %v845 = vpop.f32.mrf.mxu0
    %v846 = vadd.f32 %v804, %v845
    %v847 = vpop.f32.mrf.mxu0
    %848 = vdwg.mxu0
    %v849 = vmax.f32 %v843, 0.0
    %v850 = vmax.f32 %v846, 0.0
    %v851 = vpack.c.bf16 %v850, %v849
    %v852 = vld [vmem:[%s6] sm:$0xff]
    %v853 = vld [vmem:[%s6 + $0x8] sm:$0xff]
    %v854 = vld [vmem:[%s6 + $0x10] sm:$0xff]
    %v855 = vld [vmem:[%s6 + $0x18] sm:$0xff]
    %v856 = vld [vmem:[%s6 + $0x20] sm:$0xff]
    %v857 = vld [vmem:[%s6 + $0x28] sm:$0xff]
    %v858 = vld [vmem:[%s6 + $0x30] sm:$0xff]
    %v859 = vld [vmem:[%s6 + $0x38] sm:$0xff]
    %v860 = vld [vmem:[%s6 + $0x40] sm:$0xff]
    %v861 = vld [vmem:[%s6 + $0x48] sm:$0xff]
    %v862 = vld [vmem:[%s6 + $0x50] sm:$0xff]
    %v863 = vld [vmem:[%s6 + $0x58] sm:$0xff]
    %v864 = vld [vmem:[%s6 + $0x60] sm:$0xff]
    %v865 = vld [vmem:[%s6 + $0x68] sm:$0xff]
    %v866 = vld [vmem:[%s6 + $0x70] sm:$0xff]
    %v867 = vld [vmem:[%s6 + $0x78] sm:$0xff]
    %v868 = vpack.c.bf16 %v853, %v852
    %v869 = vpack.c.bf16 %v855, %v854
    %v870 = vpack.c.bf16 %v857, %v856
    %v871 = vpack.c.bf16 %v859, %v858
    %v872 = vpack.c.bf16 %v861, %v860
    %v873 = vpack.c.bf16 %v863, %v862
    %v874 = vpack.c.bf16 %v865, %v864
    %v875 = vpack.c.bf16 %v867, %v866
    %v876 = vlaneseq
    %v877 = vshrl.u32 %v876, 7
    %v878 = vsub.s32 7, %v877
    %v879 = vrot.slane %v145, %v878
    %880 = vmatprep.subr.bf16.mxu0 0
    %881 = vmatpush1.bf16.msra.mxu0 %v875
    %882 = vmatprep.subr.bf16.mxu0 0
    %883 = vmatpush1.bf16.msra.mxu0 %v874
    %884 = vmatprep.subr.bf16.mxu0 0
    %885 = vmatpush1.bf16.msra.mxu0 %v873
    %886 = vmatprep.subr.bf16.mxu0 0
    %887 = vmatpush1.bf16.msra.mxu0 %v872
    %888 = vmatprep.subr.bf16.mxu0 0
    %889 = vmatpush1.bf16.msra.mxu0 %v871
    %890 = vmatprep.subr.bf16.mxu0 0
    %891 = vmatpush1.bf16.msra.mxu0 %v870
    %892 = vmatprep.subr.bf16.mxu0 0
    %893 = vmatpush1.bf16.msra.mxu0 %v869
    %894 = vmatprep.subr.bf16.mxu0 0
    %895 = vmatpush1.bf16.msra.mxu0 %v868
    %896 = vmatprep.subr.bf16.mxu0 0
    %897 = vmatpush2.bf16.msra.mxu0 0
    %898 = vmatprep.subr.bf16.mxu0 0
    %899 = vmatpush2.bf16.msra.mxu0 0
    %900 = vmatprep.subr.bf16.mxu0 0
    %901 = vmatpush2.bf16.msra.mxu0 0
    %902 = vmatprep.subr.bf16.mxu0 0
    %903 = vmatpush2.bf16.msra.mxu0 0
    %904 = vmatprep.subr.bf16.mxu0 0
    %905 = vmatpush2.bf16.msra.mxu0 0
    %906 = vmatprep.subr.bf16.mxu0 0
    %907 = vmatpush2.bf16.msra.mxu0 0
    %908 = vmatprep.subr.bf16.mxu0 0
    %909 = vmatpush2.bf16.msra.mxu0 0
    %910 = vmatprep.subr.bf16.mxu0 0
    %911 = vmatpush2.bf16.msra.mxu0 0
    %912 = vmatprep.mubr.bf16.mxu0 0
    %913 = vmatmul.mubr.bf16.gmra.mxu0 %v851
    %v914 = vpop.f32.mrf.mxu0
    %v915 = vadd.f32 %v879, %v914
    %v916 = vpop.f32.mrf.mxu0
    %v917 = vpop.f32.mrf.mxu0
    %v918 = vadd.f32 %v879, %v917
    %v919 = vpop.f32.mrf.mxu0
    %920 = vdwg.mxu0
    %v921 = vadd.f32 %v792, %v915
    %v922 = vadd.f32 %v793, %v918
    %v923 = vsel %vm163, %v921, 0.0
    %924 = vadd.xlane.f32.xlu0 %v923
    %v925 = vpop.xlane.xlu0 %924
    %v926 = vsel %vm163, %v922, 0.0
    %927 = vadd.xlane.f32.xlu0 %v926
    %v928 = vpop.xlane.xlu0 %927
    %v929 = vmul.f32 %v925, %v761
    %v930 = vmul.f32 %v928, %v761
    %v931 = vsub.f32 %v921, %v929
    %v932 = vsub.f32 %v922, %v930
    %v933 = vmul.f32 %v931, %v931
    %v934 = vmul.f32 %v932, %v932
    %v935 = vsel %vm163, %v933, 0.0
    %936 = vadd.xlane.f32.xlu0 %v935
    %v937 = vpop.xlane.xlu0 %936
    %v938 = vsel %vm163, %v934, 0.0
    %939 = vadd.xlane.f32.xlu0 %v938
    %v940 = vpop.xlane.xlu0 %939
    %v941 = vmul.f32 %v937, %v761
    %v942 = vmul.f32 %v940, %v761
    %v943 = vadd.f32 %v941, 1e-05
    %v944 = vadd.f32 %v942, 1e-05
    %v945 = vrsqrt.pop %v943
    %v946 = vrsqrt.pop %v944
    %v947 = vmul.f32 %v931, %v945
    %v948 = vmul.f32 %v932, %v946
    %v949 = vlaneseq
    %v950 = vshrl.u32 %v949, 7
    %v951 = vsub.s32 4, %v950
    %v952 = vrot.slane %v145, %v951
    %v953 = vmul.f32 %v947, %v952
    %v954 = vmul.f32 %v948, %v952
    %v955 = vlaneseq
    %v956 = vshrl.u32 %v955, 7
    %v957 = vsub.s32 5, %v956
    %v958 = vrot.slane %v145, %v957
    %v959 = vadd.f32 %v953, %v958
    %v960 = vadd.f32 %v954, %v958
    %s961 = scalar_lea.vmem %s2, 8
    %v962 = vld [vmem:[%s961] sm:$0xff]
    %s963 = scalar_lea.vmem %s3, 32
    %v964 = vld [vmem:[%s963] sm:$0xff]
    %v965 = vld [vmem:[%s963 + $0x8] sm:$0xff]
    %v966 = vld [vmem:[%s963 + $0x10] sm:$0xff]
    %v967 = vld [vmem:[%s963 + $0x18] sm:$0xff]
    %v968 = vpack.c.bf16 %v965, %v964
    %v969 = vpack.c.bf16 %v967, %v966
    %s970 = scalar_lea.vmem %s4, 32
    %v971 = vld [vmem:[%s970] sm:$0xff]
    %v972 = vld [vmem:[%s970 + $0x8] sm:$0xff]
    %v973 = vld [vmem:[%s970 + $0x10] sm:$0xff]
    %v974 = vld [vmem:[%s970 + $0x18] sm:$0xff]
    %v975 = vpack.c.bf16 %v972, %v971
    %v976 = vpack.c.bf16 %v974, %v973
    %v977 = vpack.c.bf16 %v960, %v959
    %v978 = vlaneseq
    %v979 = vshrl.u32 %v978, 7
    %v980 = vsub.s32 0, %v979
    %v981 = vrot.slane %v962, %v980
    %v983 = vsel %vm163, %v977, 0
    %985 = vmatprep.subr.bf16.mxu0 0
    %986 = vmatpush1.bf16.msra.mxu0 0
    %987 = vmatprep.subr.bf16.mxu0 0
    %988 = vmatpush1.bf16.msra.mxu0 0
    %989 = vmatprep.subr.bf16.mxu0 0
    %990 = vmatpush1.bf16.msra.mxu0 0
    %991 = vmatprep.subr.bf16.mxu0 0
    %992 = vmatpush1.bf16.msra.mxu0 0
    %993 = vmatprep.subr.bf16.mxu0 0
    %994 = vmatpush1.bf16.msra.mxu0 0
    %995 = vmatprep.subr.bf16.mxu0 0
    %996 = vmatpush1.bf16.msra.mxu0 0
    %997 = vmatprep.subr.bf16.mxu0 0
    %998 = vmatpush1.bf16.msra.mxu0 %v969
    %999 = vmatprep.subr.bf16.mxu0 0
    %1000 = vmatpush1.bf16.msra.mxu0 %v968
    %1001 = vmatprep.subr.bf16.mxu0 0
    %1002 = vmatpush2.bf16.msra.mxu0 0
    %1003 = vmatprep.subr.bf16.mxu0 0
    %1004 = vmatpush2.bf16.msra.mxu0 0
    %1005 = vmatprep.subr.bf16.mxu0 0
    %1006 = vmatpush2.bf16.msra.mxu0 0
    %1007 = vmatprep.subr.bf16.mxu0 0
    %1008 = vmatpush2.bf16.msra.mxu0 0
    %1009 = vmatprep.subr.bf16.mxu0 0
    %1010 = vmatpush2.bf16.msra.mxu0 0
    %1011 = vmatprep.subr.bf16.mxu0 0
    %1012 = vmatpush2.bf16.msra.mxu0 0
    %1013 = vmatprep.subr.bf16.mxu0 0
    %1014 = vmatpush2.bf16.msra.mxu0 0
    %1015 = vmatprep.subr.bf16.mxu0 0
    %1016 = vmatpush2.bf16.msra.mxu0 0
    %1017 = vmatprep.mubr.bf16.mxu0 0
    %1018 = vmatmul.mubr.bf16.gmra.mxu0 %v983
    %v1019 = vpop.f32.mrf.mxu0
    %v1020 = vadd.f32 %v981, %v1019
    %v1021 = vpop.f32.mrf.mxu0
    %v1022 = vpop.f32.mrf.mxu0
    %v1023 = vadd.f32 %v981, %v1022
    %v1024 = vpop.f32.mrf.mxu0
    %1025 = vdwg.mxu0
    %v1026 = vmul.f32 %v1020, 0.25
    %v1027 = vmul.f32 %v1023, 0.25
    %v1028 = vpack.c.bf16 %v1026, %v1026
    %v1029 = vpack.c.bf16 %v1027, %v1027
    %v1030 = vpack.c.bf16 %v1020, %v1020
    %v1031 = vpack.c.bf16 %v1023, %v1023
    %1033 = vrot.lane.b32.xlu0 %v1030, 96
    %v1034 = vpop.permute.xlu0 %1033
    %v1036 = vsel %vm217, %v1028, 0
    %v1039 = vsel %vm217, %v1034, 0
    %1041 = vmatprep.subr.bf16.mxu0 0
    %1042 = vmatpush1.bf16.xpose.msra.mxu0 0
    %1043 = vmatprep.subr.bf16.mxu0 0
    %1044 = vmatpush1.bf16.xpose.msra.mxu0 0
    %1045 = vmatprep.subr.bf16.mxu0 0
    %1046 = vmatpush1.bf16.xpose.msra.mxu0 0
    %1047 = vmatprep.subr.bf16.mxu0 0
    %1048 = vmatpush1.bf16.xpose.msra.mxu0 0
    %1049 = vmatprep.subr.bf16.mxu0 0
    %1050 = vmatpush1.bf16.xpose.msra.mxu0 0
    %1051 = vmatprep.subr.bf16.mxu0 0
    %1052 = vmatpush1.bf16.xpose.msra.mxu0 0
    %1053 = vmatprep.subr.bf16.mxu0 0
    %1054 = vmatpush1.bf16.xpose.msra.mxu0 0
    %1055 = vmatprep.subr.bf16.mxu0 0
    %1056 = vmatpush1.bf16.xpose.msra.mxu0 %v1039
    %1057 = vmatprep.subr.bf16.mxu0 0
    %1058 = vmatpush2.bf16.xpose.msra.mxu0 0
    %1059 = vmatprep.subr.bf16.mxu0 0
    %1060 = vmatpush2.bf16.xpose.msra.mxu0 0
    %1061 = vmatprep.subr.bf16.mxu0 0
    %1062 = vmatpush2.bf16.xpose.msra.mxu0 0
    %1063 = vmatprep.subr.bf16.mxu0 0
    %1064 = vmatpush2.bf16.xpose.msra.mxu0 0
    %1065 = vmatprep.subr.bf16.mxu0 0
    %1066 = vmatpush2.bf16.xpose.msra.mxu0 0
    %1067 = vmatprep.subr.bf16.mxu0 0
    %1068 = vmatpush2.bf16.xpose.msra.mxu0 0
    %1069 = vmatprep.subr.bf16.mxu0 0
    %1070 = vmatpush2.bf16.xpose.msra.mxu0 0
    %1071 = vmatprep.subr.bf16.mxu0 0
    %1072 = vmatpush2.bf16.xpose.msra.mxu0 0
    %1073 = vmatprep.mubr.bf16.mxu0 0
    %1074 = vmatmul.mubr.bf16.gmra.mxu0 %v1036
    %v1075 = vpop.f32.mrf.mxu0
    %v1076 = vadd.f32 %v144, %v1075
    %v1077 = vpop.f32.mrf.mxu0
    %v1078 = vpop.f32.mrf.mxu0
    %v1079 = vpop.f32.mrf.mxu0
    %1080 = vdwg.mxu0
    %1082 = vrot.lane.b32.xlu0 %v1031, 96
    %v1083 = vpop.permute.xlu0 %1082
    %v1085 = vsel %vm217, %v1029, 0
    %v1088 = vsel %vm217, %v1083, 0
    %1090 = vmatprep.subr.bf16.mxu0 0
    %1091 = vmatpush1.bf16.xpose.msra.mxu0 0
    %1092 = vmatprep.subr.bf16.mxu0 0
    %1093 = vmatpush1.bf16.xpose.msra.mxu0 0
    %1094 = vmatprep.subr.bf16.mxu0 0
    %1095 = vmatpush1.bf16.xpose.msra.mxu0 0
    %1096 = vmatprep.subr.bf16.mxu0 0
    %1097 = vmatpush1.bf16.xpose.msra.mxu0 0
    %1098 = vmatprep.subr.bf16.mxu0 0
    %1099 = vmatpush1.bf16.xpose.msra.mxu0 0
    %1100 = vmatprep.subr.bf16.mxu0 0
    %1101 = vmatpush1.bf16.xpose.msra.mxu0 0
    %1102 = vmatprep.subr.bf16.mxu0 0
    %1103 = vmatpush1.bf16.xpose.msra.mxu0 0
    %1104 = vmatprep.subr.bf16.mxu0 0
    %1105 = vmatpush1.bf16.xpose.msra.mxu0 %v1088
    %1106 = vmatprep.subr.bf16.mxu0 0
    %1107 = vmatpush2.bf16.xpose.msra.mxu0 0
    %1108 = vmatprep.subr.bf16.mxu0 0
    %1109 = vmatpush2.bf16.xpose.msra.mxu0 0
    %1110 = vmatprep.subr.bf16.mxu0 0
    %1111 = vmatpush2.bf16.xpose.msra.mxu0 0
    %1112 = vmatprep.subr.bf16.mxu0 0
    %1113 = vmatpush2.bf16.xpose.msra.mxu0 0
    %1114 = vmatprep.subr.bf16.mxu0 0
    %1115 = vmatpush2.bf16.xpose.msra.mxu0 0
    %1116 = vmatprep.subr.bf16.mxu0 0
    %1117 = vmatpush2.bf16.xpose.msra.mxu0 0
    %1118 = vmatprep.subr.bf16.mxu0 0
    %1119 = vmatpush2.bf16.xpose.msra.mxu0 0
    %1120 = vmatprep.subr.bf16.mxu0 0
    %1121 = vmatpush2.bf16.xpose.msra.mxu0 0
    %1122 = vmatprep.mubr.bf16.mxu0 0
    %1123 = vmatmul.mubr.bf16.gmra.mxu0 %v1085
    %v1124 = vpop.f32.mrf.mxu0
    %v1125 = vadd.f32 %v144, %v1124
    %v1126 = vpop.f32.mrf.mxu0
    %v1127 = vpop.f32.mrf.mxu0
    %v1128 = vpop.f32.mrf.mxu0
    %1129 = vdwg.mxu0
    %v1130 = vsel %vm313, %v1076, -inf
    %1131 = vmax.xlane.f32.xlu0 %v1130
    %v1132 = vpop.xlane.xlu0 %1131
    %v1133 = vsel %vm313, %v1125, -inf
    %1134 = vmax.xlane.f32.xlu0 %v1133
    %v1135 = vpop.xlane.xlu0 %1134
    %v1136 = vsub.f32 %v1076, %v1132
    %v1137 = vsub.f32 %v1125, %v1135
    %v1138 = vmul.f32 %v1136, 1.442695
    %v1139 = vpow.pop %v1138
    %v1140 = vmul.f32 %v1137, 1.442695
    %v1141 = vpow.pop %v1140
    %v1142 = vsel %vm313, %v1139, 0.0
    %1143 = vadd.xlane.f32.xlu0 %v1142
    %v1144 = vpop.xlane.xlu0 %1143
    %v1145 = vsel %vm313, %v1141, 0.0
    %1146 = vadd.xlane.f32.xlu0 %v1145
    %v1147 = vpop.xlane.xlu0 %1146
    %v1148 = vrcp.pop %v1144
    %v1149 = vrcp.pop %v1147
    %v1150 = vmul.f32 %v1139, %v1148
    %v1151 = vmul.f32 %v1141, %v1149
    %v1152 = vpack.c.bf16 %v1150, %v1150
    %v1153 = vpack.c.bf16 %v1151, %v1151
    %1154 = vrot.lane.b32.xlu0 %v1030, 64
    %v1155 = vpop.permute.xlu0 %1154
    %v1157 = vsel %vm313, %v1152, 0
    %v1160 = vsel %vm343, %v1155, 0
    %1162 = vmatprep.subr.bf16.mxu0 0
    %1163 = vmatpush1.bf16.msra.mxu0 0
    %1164 = vmatprep.subr.bf16.mxu0 0
    %1165 = vmatpush1.bf16.msra.mxu0 0
    %1166 = vmatprep.subr.bf16.mxu0 0
    %1167 = vmatpush1.bf16.msra.mxu0 0
    %1168 = vmatprep.subr.bf16.mxu0 0
    %1169 = vmatpush1.bf16.msra.mxu0 0
    %1170 = vmatprep.subr.bf16.mxu0 0
    %1171 = vmatpush1.bf16.msra.mxu0 0
    %1172 = vmatprep.subr.bf16.mxu0 0
    %1173 = vmatpush1.bf16.msra.mxu0 0
    %1174 = vmatprep.subr.bf16.mxu0 0
    %1175 = vmatpush1.bf16.msra.mxu0 0
    %1176 = vmatprep.subr.bf16.mxu0 0
    %1177 = vmatpush1.bf16.msra.mxu0 %v1160
    %1178 = vmatprep.subr.bf16.mxu0 0
    %1179 = vmatpush2.bf16.msra.mxu0 0
    %1180 = vmatprep.subr.bf16.mxu0 0
    %1181 = vmatpush2.bf16.msra.mxu0 0
    %1182 = vmatprep.subr.bf16.mxu0 0
    %1183 = vmatpush2.bf16.msra.mxu0 0
    %1184 = vmatprep.subr.bf16.mxu0 0
    %1185 = vmatpush2.bf16.msra.mxu0 0
    %1186 = vmatprep.subr.bf16.mxu0 0
    %1187 = vmatpush2.bf16.msra.mxu0 0
    %1188 = vmatprep.subr.bf16.mxu0 0
    %1189 = vmatpush2.bf16.msra.mxu0 0
    %1190 = vmatprep.subr.bf16.mxu0 0
    %1191 = vmatpush2.bf16.msra.mxu0 0
    %1192 = vmatprep.subr.bf16.mxu0 0
    %1193 = vmatpush2.bf16.msra.mxu0 0
    %1194 = vmatprep.mubr.bf16.mxu0 0
    %1195 = vmatmul.mubr.bf16.gmra.mxu0 %v1157
    %v1196 = vpop.f32.mrf.mxu0
    %v1197 = vadd.f32 0.0, %v1196
    %v1198 = vpop.f32.mrf.mxu0
    %v1199 = vpop.f32.mrf.mxu0
    %v1200 = vpop.f32.mrf.mxu0
    %1201 = vdwg.mxu0
    %1202 = vrot.lane.b32.xlu0 %v1031, 64
    %v1203 = vpop.permute.xlu0 %1202
    %v1205 = vsel %vm313, %v1153, 0
    %v1208 = vsel %vm343, %v1203, 0
    %1210 = vmatprep.subr.bf16.mxu0 0
    %1211 = vmatpush1.bf16.msra.mxu0 0
    %1212 = vmatprep.subr.bf16.mxu0 0
    %1213 = vmatpush1.bf16.msra.mxu0 0
    %1214 = vmatprep.subr.bf16.mxu0 0
    %1215 = vmatpush1.bf16.msra.mxu0 0
    %1216 = vmatprep.subr.bf16.mxu0 0
    %1217 = vmatpush1.bf16.msra.mxu0 0
    %1218 = vmatprep.subr.bf16.mxu0 0
    %1219 = vmatpush1.bf16.msra.mxu0 0
    %1220 = vmatprep.subr.bf16.mxu0 0
    %1221 = vmatpush1.bf16.msra.mxu0 0
    %1222 = vmatprep.subr.bf16.mxu0 0
    %1223 = vmatpush1.bf16.msra.mxu0 0
    %1224 = vmatprep.subr.bf16.mxu0 0
    %1225 = vmatpush1.bf16.msra.mxu0 %v1208
    %1226 = vmatprep.subr.bf16.mxu0 0
    %1227 = vmatpush2.bf16.msra.mxu0 0
    %1228 = vmatprep.subr.bf16.mxu0 0
    %1229 = vmatpush2.bf16.msra.mxu0 0
    %1230 = vmatprep.subr.bf16.mxu0 0
    %1231 = vmatpush2.bf16.msra.mxu0 0
    %1232 = vmatprep.subr.bf16.mxu0 0
    %1233 = vmatpush2.bf16.msra.mxu0 0
    %1234 = vmatprep.subr.bf16.mxu0 0
    %1235 = vmatpush2.bf16.msra.mxu0 0
    %1236 = vmatprep.subr.bf16.mxu0 0
    %1237 = vmatpush2.bf16.msra.mxu0 0
    %1238 = vmatprep.subr.bf16.mxu0 0
    %1239 = vmatpush2.bf16.msra.mxu0 0
    %1240 = vmatprep.subr.bf16.mxu0 0
    %1241 = vmatpush2.bf16.msra.mxu0 0
    %1242 = vmatprep.mubr.bf16.mxu0 0
    %1243 = vmatmul.mubr.bf16.gmra.mxu0 %v1205
    %v1244 = vpop.f32.mrf.mxu0
    %v1245 = vadd.f32 0.0, %v1244
    %v1246 = vpop.f32.mrf.mxu0
    %v1247 = vpop.f32.mrf.mxu0
    %v1248 = vpop.f32.mrf.mxu0
    %1249 = vdwg.mxu0
    %v1250 = vpack.c.bf16 %v1245, %v1197
    %1252 = vrot.lane.b32.xlu0 %v1028, 112
    %v1253 = vpop.permute.xlu0 %1252
    %1254 = vrot.lane.b32.xlu0 %v1030, 80
    %v1255 = vpop.permute.xlu0 %1254
    %v1257 = vsel %vm217, %v1253, 0
    %v1260 = vsel %vm217, %v1255, 0
    %1262 = vmatprep.subr.bf16.mxu0 0
    %1263 = vmatpush1.bf16.xpose.msra.mxu0 0
    %1264 = vmatprep.subr.bf16.mxu0 0
    %1265 = vmatpush1.bf16.xpose.msra.mxu0 0
    %1266 = vmatprep.subr.bf16.mxu0 0
    %1267 = vmatpush1.bf16.xpose.msra.mxu0 0
    %1268 = vmatprep.subr.bf16.mxu0 0
    %1269 = vmatpush1.bf16.xpose.msra.mxu0 0
    %1270 = vmatprep.subr.bf16.mxu0 0
    %1271 = vmatpush1.bf16.xpose.msra.mxu0 0
    %1272 = vmatprep.subr.bf16.mxu0 0
    %1273 = vmatpush1.bf16.xpose.msra.mxu0 0
    %1274 = vmatprep.subr.bf16.mxu0 0
    %1275 = vmatpush1.bf16.xpose.msra.mxu0 0
    %1276 = vmatprep.subr.bf16.mxu0 0
    %1277 = vmatpush1.bf16.xpose.msra.mxu0 %v1260
    %1278 = vmatprep.subr.bf16.mxu0 0
    %1279 = vmatpush2.bf16.xpose.msra.mxu0 0
    %1280 = vmatprep.subr.bf16.mxu0 0
    %1281 = vmatpush2.bf16.xpose.msra.mxu0 0
    %1282 = vmatprep.subr.bf16.mxu0 0
    %1283 = vmatpush2.bf16.xpose.msra.mxu0 0
    %1284 = vmatprep.subr.bf16.mxu0 0
    %1285 = vmatpush2.bf16.xpose.msra.mxu0 0
    %1286 = vmatprep.subr.bf16.mxu0 0
    %1287 = vmatpush2.bf16.xpose.msra.mxu0 0
    %1288 = vmatprep.subr.bf16.mxu0 0
    %1289 = vmatpush2.bf16.xpose.msra.mxu0 0
    %1290 = vmatprep.subr.bf16.mxu0 0
    %1291 = vmatpush2.bf16.xpose.msra.mxu0 0
    %1292 = vmatprep.subr.bf16.mxu0 0
    %1293 = vmatpush2.bf16.xpose.msra.mxu0 0
    %1294 = vmatprep.mubr.bf16.mxu0 0
    %1295 = vmatmul.mubr.bf16.gmra.mxu0 %v1257
    %v1296 = vpop.f32.mrf.mxu0
    %v1297 = vadd.f32 %v144, %v1296
    %v1298 = vpop.f32.mrf.mxu0
    %v1299 = vpop.f32.mrf.mxu0
    %v1300 = vpop.f32.mrf.mxu0
    %1301 = vdwg.mxu0
    %1303 = vrot.lane.b32.xlu0 %v1029, 112
    %v1304 = vpop.permute.xlu0 %1303
    %1305 = vrot.lane.b32.xlu0 %v1031, 80
    %v1306 = vpop.permute.xlu0 %1305
    %v1308 = vsel %vm217, %v1304, 0
    %v1311 = vsel %vm217, %v1306, 0
    %1313 = vmatprep.subr.bf16.mxu0 0
    %1314 = vmatpush1.bf16.xpose.msra.mxu0 0
    %1315 = vmatprep.subr.bf16.mxu0 0
    %1316 = vmatpush1.bf16.xpose.msra.mxu0 0
    %1317 = vmatprep.subr.bf16.mxu0 0
    %1318 = vmatpush1.bf16.xpose.msra.mxu0 0
    %1319 = vmatprep.subr.bf16.mxu0 0
    %1320 = vmatpush1.bf16.xpose.msra.mxu0 0
    %1321 = vmatprep.subr.bf16.mxu0 0
    %1322 = vmatpush1.bf16.xpose.msra.mxu0 0
    %1323 = vmatprep.subr.bf16.mxu0 0
    %1324 = vmatpush1.bf16.xpose.msra.mxu0 0
    %1325 = vmatprep.subr.bf16.mxu0 0
    %1326 = vmatpush1.bf16.xpose.msra.mxu0 0
    %1327 = vmatprep.subr.bf16.mxu0 0
    %1328 = vmatpush1.bf16.xpose.msra.mxu0 %v1311
    %1329 = vmatprep.subr.bf16.mxu0 0
    %1330 = vmatpush2.bf16.xpose.msra.mxu0 0
    %1331 = vmatprep.subr.bf16.mxu0 0
    %1332 = vmatpush2.bf16.xpose.msra.mxu0 0
    %1333 = vmatprep.subr.bf16.mxu0 0
    %1334 = vmatpush2.bf16.xpose.msra.mxu0 0
    %1335 = vmatprep.subr.bf16.mxu0 0
    %1336 = vmatpush2.bf16.xpose.msra.mxu0 0
    %1337 = vmatprep.subr.bf16.mxu0 0
    %1338 = vmatpush2.bf16.xpose.msra.mxu0 0
    %1339 = vmatprep.subr.bf16.mxu0 0
    %1340 = vmatpush2.bf16.xpose.msra.mxu0 0
    %1341 = vmatprep.subr.bf16.mxu0 0
    %1342 = vmatpush2.bf16.xpose.msra.mxu0 0
    %1343 = vmatprep.subr.bf16.mxu0 0
    %1344 = vmatpush2.bf16.xpose.msra.mxu0 0
    %1345 = vmatprep.mubr.bf16.mxu0 0
    %1346 = vmatmul.mubr.bf16.gmra.mxu0 %v1308
    %v1347 = vpop.f32.mrf.mxu0
    %v1348 = vadd.f32 %v144, %v1347
    %v1349 = vpop.f32.mrf.mxu0
    %v1350 = vpop.f32.mrf.mxu0
    %v1351 = vpop.f32.mrf.mxu0
    %1352 = vdwg.mxu0
    %v1353 = vsel %vm313, %v1297, -inf
    %1354 = vmax.xlane.f32.xlu0 %v1353
    %v1355 = vpop.xlane.xlu0 %1354
    %v1356 = vsel %vm313, %v1348, -inf
    %1357 = vmax.xlane.f32.xlu0 %v1356
    %v1358 = vpop.xlane.xlu0 %1357
    %v1359 = vsub.f32 %v1297, %v1355
    %v1360 = vsub.f32 %v1348, %v1358
    %v1361 = vmul.f32 %v1359, 1.442695
    %v1362 = vpow.pop %v1361
    %v1363 = vmul.f32 %v1360, 1.442695
    %v1364 = vpow.pop %v1363
    %v1365 = vsel %vm313, %v1362, 0.0
    %1366 = vadd.xlane.f32.xlu0 %v1365
    %v1367 = vpop.xlane.xlu0 %1366
    %v1368 = vsel %vm313, %v1364, 0.0
    %1369 = vadd.xlane.f32.xlu0 %v1368
    %v1370 = vpop.xlane.xlu0 %1369
    %v1371 = vrcp.pop %v1367
    %v1372 = vrcp.pop %v1370
    %v1373 = vmul.f32 %v1362, %v1371
    %v1374 = vmul.f32 %v1364, %v1372
    %v1375 = vpack.c.bf16 %v1373, %v1373
    %v1376 = vpack.c.bf16 %v1374, %v1374
    %1377 = vrot.lane.b32.xlu0 %v1030, 48
    %v1378 = vpop.permute.xlu0 %1377
    %v1380 = vsel %vm313, %v1375, 0
    %v1383 = vsel %vm343, %v1378, 0
    %1385 = vmatprep.subr.bf16.mxu0 0
    %1386 = vmatpush1.bf16.msra.mxu0 0
    %1387 = vmatprep.subr.bf16.mxu0 0
    %1388 = vmatpush1.bf16.msra.mxu0 0
    %1389 = vmatprep.subr.bf16.mxu0 0
    %1390 = vmatpush1.bf16.msra.mxu0 0
    %1391 = vmatprep.subr.bf16.mxu0 0
    %1392 = vmatpush1.bf16.msra.mxu0 0
    %1393 = vmatprep.subr.bf16.mxu0 0
    %1394 = vmatpush1.bf16.msra.mxu0 0
    %1395 = vmatprep.subr.bf16.mxu0 0
    %1396 = vmatpush1.bf16.msra.mxu0 0
    %1397 = vmatprep.subr.bf16.mxu0 0
    %1398 = vmatpush1.bf16.msra.mxu0 0
    %1399 = vmatprep.subr.bf16.mxu0 0
    %1400 = vmatpush1.bf16.msra.mxu0 %v1383
    %1401 = vmatprep.subr.bf16.mxu0 0
    %1402 = vmatpush2.bf16.msra.mxu0 0
    %1403 = vmatprep.subr.bf16.mxu0 0
    %1404 = vmatpush2.bf16.msra.mxu0 0
    %1405 = vmatprep.subr.bf16.mxu0 0
    %1406 = vmatpush2.bf16.msra.mxu0 0
    %1407 = vmatprep.subr.bf16.mxu0 0
    %1408 = vmatpush2.bf16.msra.mxu0 0
    %1409 = vmatprep.subr.bf16.mxu0 0
    %1410 = vmatpush2.bf16.msra.mxu0 0
    %1411 = vmatprep.subr.bf16.mxu0 0
    %1412 = vmatpush2.bf16.msra.mxu0 0
    %1413 = vmatprep.subr.bf16.mxu0 0
    %1414 = vmatpush2.bf16.msra.mxu0 0
    %1415 = vmatprep.subr.bf16.mxu0 0
    %1416 = vmatpush2.bf16.msra.mxu0 0
    %1417 = vmatprep.mubr.bf16.mxu0 0
    %1418 = vmatmul.mubr.bf16.gmra.mxu0 %v1380
    %v1419 = vpop.f32.mrf.mxu0
    %v1420 = vadd.f32 0.0, %v1419
    %v1421 = vpop.f32.mrf.mxu0
    %v1422 = vpop.f32.mrf.mxu0
    %v1423 = vpop.f32.mrf.mxu0
    %1424 = vdwg.mxu0
    %1425 = vrot.lane.b32.xlu0 %v1031, 48
    %v1426 = vpop.permute.xlu0 %1425
    %v1428 = vsel %vm313, %v1376, 0
    %v1431 = vsel %vm343, %v1426, 0
    %1433 = vmatprep.subr.bf16.mxu0 0
    %1434 = vmatpush1.bf16.msra.mxu0 0
    %1435 = vmatprep.subr.bf16.mxu0 0
    %1436 = vmatpush1.bf16.msra.mxu0 0
    %1437 = vmatprep.subr.bf16.mxu0 0
    %1438 = vmatpush1.bf16.msra.mxu0 0
    %1439 = vmatprep.subr.bf16.mxu0 0
    %1440 = vmatpush1.bf16.msra.mxu0 0
    %1441 = vmatprep.subr.bf16.mxu0 0
    %1442 = vmatpush1.bf16.msra.mxu0 0
    %1443 = vmatprep.subr.bf16.mxu0 0
    %1444 = vmatpush1.bf16.msra.mxu0 0
    %1445 = vmatprep.subr.bf16.mxu0 0
    %1446 = vmatpush1.bf16.msra.mxu0 0
    %1447 = vmatprep.subr.bf16.mxu0 0
    %1448 = vmatpush1.bf16.msra.mxu0 %v1431
    %1449 = vmatprep.subr.bf16.mxu0 0
    %1450 = vmatpush2.bf16.msra.mxu0 0
    %1451 = vmatprep.subr.bf16.mxu0 0
    %1452 = vmatpush2.bf16.msra.mxu0 0
    %1453 = vmatprep.subr.bf16.mxu0 0
    %1454 = vmatpush2.bf16.msra.mxu0 0
    %1455 = vmatprep.subr.bf16.mxu0 0
    %1456 = vmatpush2.bf16.msra.mxu0 0
    %1457 = vmatprep.subr.bf16.mxu0 0
    %1458 = vmatpush2.bf16.msra.mxu0 0
    %1459 = vmatprep.subr.bf16.mxu0 0
    %1460 = vmatpush2.bf16.msra.mxu0 0
    %1461 = vmatprep.subr.bf16.mxu0 0
    %1462 = vmatpush2.bf16.msra.mxu0 0
    %1463 = vmatprep.subr.bf16.mxu0 0
    %1464 = vmatpush2.bf16.msra.mxu0 0
    %1465 = vmatprep.mubr.bf16.mxu0 0
    %1466 = vmatmul.mubr.bf16.gmra.mxu0 %v1428
    %v1467 = vpop.f32.mrf.mxu0
    %v1468 = vadd.f32 0.0, %v1467
    %v1469 = vpop.f32.mrf.mxu0
    %v1470 = vpop.f32.mrf.mxu0
    %v1471 = vpop.f32.mrf.mxu0
    %1472 = vdwg.mxu0
    %v1473 = vpack.c.bf16 %v1468, %v1420
    %v1475 = vsel %vm217, %v1473, 0
    %1477 = vmatprep.subr.bf16.mxu0 0
    %1478 = vmatpush1.bf16.msra.mxu0 0
    %1479 = vmatprep.subr.bf16.mxu0 0
    %1480 = vmatpush1.bf16.msra.mxu0 0
    %1481 = vmatprep.subr.bf16.mxu0 0
    %1482 = vmatpush1.bf16.msra.mxu0 0
    %1483 = vmatprep.subr.bf16.mxu0 0
    %1484 = vmatpush1.bf16.msra.mxu0 0
    %1485 = vmatprep.subr.bf16.mxu0 0
    %1486 = vmatpush1.bf16.msra.mxu0 0
    %1487 = vmatprep.subr.bf16.mxu0 0
    %1488 = vmatpush1.bf16.msra.mxu0 0
    %1489 = vmatprep.subr.bf16.mxu0 0
    %1490 = vmatpush1.bf16.msra.mxu0 0
    %1491 = vmatprep.subr.bf16.mxu0 0
    %1492 = vmatpush1.bf16.msra.mxu0 %v976
    %1493 = vmatprep.subr.bf16.mxu0 0
    %1494 = vmatpush2.bf16.msra.mxu0 0
    %1495 = vmatprep.subr.bf16.mxu0 0
    %1496 = vmatpush2.bf16.msra.mxu0 0
    %1497 = vmatprep.subr.bf16.mxu0 0
    %1498 = vmatpush2.bf16.msra.mxu0 0
    %1499 = vmatprep.subr.bf16.mxu0 0
    %1500 = vmatpush2.bf16.msra.mxu0 0
    %1501 = vmatprep.subr.bf16.mxu0 0
    %1502 = vmatpush2.bf16.msra.mxu0 0
    %1503 = vmatprep.subr.bf16.mxu0 0
    %1504 = vmatpush2.bf16.msra.mxu0 0
    %1505 = vmatprep.subr.bf16.mxu0 0
    %1506 = vmatpush2.bf16.msra.mxu0 0
    %1507 = vmatprep.subr.bf16.mxu0 0
    %1508 = vmatpush2.bf16.msra.mxu0 0
    %1509 = vmatprep.mubr.bf16.mxu0 0
    %1510 = vmatmul.mubr.bf16.gmra.mxu0 %v1475
    %v1511 = vpop.f32.mrf.mxu0
    %v1512 = vadd.f32 0.0, %v1511
    %v1513 = vpop.f32.mrf.mxu0
    %v1514 = vpop.f32.mrf.mxu0
    %v1515 = vadd.f32 0.0, %v1514
    %v1516 = vpop.f32.mrf.mxu0
    %1517 = vdwg.mxu0
    %v1519 = vsel %vm217, %v1250, 0
    %1521 = vmatprep.subr.bf16.mxu0 0
    %1522 = vmatpush1.bf16.msra.mxu0 0
    %1523 = vmatprep.subr.bf16.mxu0 0
    %1524 = vmatpush1.bf16.msra.mxu0 0
    %1525 = vmatprep.subr.bf16.mxu0 0
    %1526 = vmatpush1.bf16.msra.mxu0 0
    %1527 = vmatprep.subr.bf16.mxu0 0
    %1528 = vmatpush1.bf16.msra.mxu0 0
    %1529 = vmatprep.subr.bf16.mxu0 0
    %1530 = vmatpush1.bf16.msra.mxu0 0
    %1531 = vmatprep.subr.bf16.mxu0 0
    %1532 = vmatpush1.bf16.msra.mxu0 0
    %1533 = vmatprep.subr.bf16.mxu0 0
    %1534 = vmatpush1.bf16.msra.mxu0 0
    %1535 = vmatprep.subr.bf16.mxu0 0
    %1536 = vmatpush1.bf16.msra.mxu0 %v975
    %1537 = vmatprep.subr.bf16.mxu0 0
    %1538 = vmatpush2.bf16.msra.mxu0 0
    %1539 = vmatprep.subr.bf16.mxu0 0
    %1540 = vmatpush2.bf16.msra.mxu0 0
    %1541 = vmatprep.subr.bf16.mxu0 0
    %1542 = vmatpush2.bf16.msra.mxu0 0
    %1543 = vmatprep.subr.bf16.mxu0 0
    %1544 = vmatpush2.bf16.msra.mxu0 0
    %1545 = vmatprep.subr.bf16.mxu0 0
    %1546 = vmatpush2.bf16.msra.mxu0 0
    %1547 = vmatprep.subr.bf16.mxu0 0
    %1548 = vmatpush2.bf16.msra.mxu0 0
    %1549 = vmatprep.subr.bf16.mxu0 0
    %1550 = vmatpush2.bf16.msra.mxu0 0
    %1551 = vmatprep.subr.bf16.mxu0 0
    %1552 = vmatpush2.bf16.msra.mxu0 0
    %1553 = vmatprep.mubr.bf16.mxu0 0
    %1554 = vmatmul.mubr.bf16.gmra.mxu0 %v1519
    %v1555 = vpop.f32.mrf.mxu0
    %v1556 = vadd.f32 %v1512, %v1555
    %v1557 = vpop.f32.mrf.mxu0
    %v1558 = vpop.f32.mrf.mxu0
    %v1559 = vadd.f32 %v1515, %v1558
    %v1560 = vpop.f32.mrf.mxu0
    %1561 = vdwg.mxu0
    %v1562 = vlaneseq
    %v1563 = vshrl.u32 %v1562, 7
    %v1564 = vsub.s32 1, %v1563
    %v1565 = vrot.slane %v962, %v1564
    %v1566 = vadd.f32 %v1556, %v1565
    %v1567 = vadd.f32 %v1559, %v1565
    %v1568 = vadd.f32 %v959, %v1566
    %v1569 = vadd.f32 %v960, %v1567
    %v1570 = vsel %vm163, %v1568, 0.0
    %1571 = vadd.xlane.f32.xlu0 %v1570
    %v1572 = vpop.xlane.xlu0 %1571
    %v1573 = vsel %vm163, %v1569, 0.0
    %1574 = vadd.xlane.f32.xlu0 %v1573
    %v1575 = vpop.xlane.xlu0 %1574
    %v1576 = vmul.f32 %v1572, %v761
    %v1577 = vmul.f32 %v1575, %v761
    %v1578 = vsub.f32 %v1568, %v1576
    %v1579 = vsub.f32 %v1569, %v1577
    %v1580 = vmul.f32 %v1578, %v1578
    %v1581 = vmul.f32 %v1579, %v1579
    %v1582 = vsel %vm163, %v1580, 0.0
    %1583 = vadd.xlane.f32.xlu0 %v1582
    %v1584 = vpop.xlane.xlu0 %1583
    %v1585 = vsel %vm163, %v1581, 0.0
    %1586 = vadd.xlane.f32.xlu0 %v1585
    %v1587 = vpop.xlane.xlu0 %1586
    %v1588 = vmul.f32 %v1584, %v761
    %v1589 = vmul.f32 %v1587, %v761
    %v1590 = vadd.f32 %v1588, 1e-05
    %v1591 = vadd.f32 %v1589, 1e-05
    %v1592 = vrsqrt.pop %v1590
    %v1593 = vrsqrt.pop %v1591
    %v1594 = vmul.f32 %v1578, %v1592
    %v1595 = vmul.f32 %v1579, %v1593
    %v1596 = vlaneseq
    %v1597 = vshrl.u32 %v1596, 7
    %v1598 = vsub.s32 2, %v1597
    %v1599 = vrot.slane %v962, %v1598
    %v1600 = vmul.f32 %v1594, %v1599
    %v1601 = vmul.f32 %v1595, %v1599
    %v1602 = vlaneseq
    %v1603 = vshrl.u32 %v1602, 7
    %v1604 = vsub.s32 3, %v1603
    %v1605 = vrot.slane %v962, %v1604
    %v1606 = vadd.f32 %v1600, %v1605
    %v1607 = vadd.f32 %v1601, %v1605
    %v1608 = vpack.c.bf16 %v1607, %v1606
    %s1609 = scalar_lea.vmem %s5, 32
    %v1610 = vld [vmem:[%s1609] sm:$0xff]
    %v1611 = vld [vmem:[%s1609 + $0x8] sm:$0xff]
    %v1612 = vld [vmem:[%s1609 + $0x10] sm:$0xff]
    %v1613 = vld [vmem:[%s1609 + $0x18] sm:$0xff]
    %v1614 = vpack.c.bf16 %v1611, %v1610
    %v1615 = vpack.c.bf16 %v1613, %v1612
    %v1616 = vlaneseq
    %v1617 = vshrl.u32 %v1616, 7
    %v1618 = vsub.s32 6, %v1617
    %v1619 = vrot.slane %v962, %v1618
    %v1621 = vsel %vm163, %v1608, 0
    %1623 = vmatprep.subr.bf16.mxu0 0
    %1624 = vmatpush1.bf16.msra.mxu0 0
    %1625 = vmatprep.subr.bf16.mxu0 0
    %1626 = vmatpush1.bf16.msra.mxu0 0
    %1627 = vmatprep.subr.bf16.mxu0 0
    %1628 = vmatpush1.bf16.msra.mxu0 0
    %1629 = vmatprep.subr.bf16.mxu0 0
    %1630 = vmatpush1.bf16.msra.mxu0 0
    %1631 = vmatprep.subr.bf16.mxu0 0
    %1632 = vmatpush1.bf16.msra.mxu0 0
    %1633 = vmatprep.subr.bf16.mxu0 0
    %1634 = vmatpush1.bf16.msra.mxu0 0
    %1635 = vmatprep.subr.bf16.mxu0 0
    %1636 = vmatpush1.bf16.msra.mxu0 %v1615
    %1637 = vmatprep.subr.bf16.mxu0 0
    %1638 = vmatpush1.bf16.msra.mxu0 %v1614
    %1639 = vmatprep.subr.bf16.mxu0 0
    %1640 = vmatpush2.bf16.msra.mxu0 0
    %1641 = vmatprep.subr.bf16.mxu0 0
    %1642 = vmatpush2.bf16.msra.mxu0 0
    %1643 = vmatprep.subr.bf16.mxu0 0
    %1644 = vmatpush2.bf16.msra.mxu0 0
    %1645 = vmatprep.subr.bf16.mxu0 0
    %1646 = vmatpush2.bf16.msra.mxu0 0
    %1647 = vmatprep.subr.bf16.mxu0 0
    %1648 = vmatpush2.bf16.msra.mxu0 0
    %1649 = vmatprep.subr.bf16.mxu0 0
    %1650 = vmatpush2.bf16.msra.mxu0 0
    %1651 = vmatprep.subr.bf16.mxu0 0
    %1652 = vmatpush2.bf16.msra.mxu0 0
    %1653 = vmatprep.subr.bf16.mxu0 0
    %1654 = vmatpush2.bf16.msra.mxu0 0
    %1655 = vmatprep.mubr.bf16.mxu0 0
    %1656 = vmatmul.mubr.bf16.gmra.mxu0 %v1621
    %v1657 = vpop.f32.mrf.mxu0
    %v1658 = vadd.f32 %v1619, %v1657
    %v1659 = vpop.f32.mrf.mxu0
    %v1660 = vpop.f32.mrf.mxu0
    %v1661 = vadd.f32 %v1619, %v1660
    %v1662 = vpop.f32.mrf.mxu0
    %1663 = vdwg.mxu0
    %v1664 = vmax.f32 %v1658, 0.0
    %v1665 = vmax.f32 %v1661, 0.0
    %v1666 = vpack.c.bf16 %v1665, %v1664
    %s1667 = scalar_lea.vmem %s6, 128
    %v1668 = vld [vmem:[%s1667] sm:$0xff]
    %v1669 = vld [vmem:[%s1667 + $0x8] sm:$0xff]
    %v1670 = vld [vmem:[%s1667 + $0x10] sm:$0xff]
    %v1671 = vld [vmem:[%s1667 + $0x18] sm:$0xff]
    %v1672 = vld [vmem:[%s1667 + $0x20] sm:$0xff]
    %v1673 = vld [vmem:[%s1667 + $0x28] sm:$0xff]
    %v1674 = vld [vmem:[%s1667 + $0x30] sm:$0xff]
    %v1675 = vld [vmem:[%s1667 + $0x38] sm:$0xff]
    %v1676 = vld [vmem:[%s1667 + $0x40] sm:$0xff]
    %v1677 = vld [vmem:[%s1667 + $0x48] sm:$0xff]
    %v1678 = vld [vmem:[%s1667 + $0x50] sm:$0xff]
    %v1679 = vld [vmem:[%s1667 + $0x58] sm:$0xff]
    %v1680 = vld [vmem:[%s1667 + $0x60] sm:$0xff]
    %v1681 = vld [vmem:[%s1667 + $0x68] sm:$0xff]
    %v1682 = vld [vmem:[%s1667 + $0x70] sm:$0xff]
    %v1683 = vld [vmem:[%s1667 + $0x78] sm:$0xff]
    %v1684 = vpack.c.bf16 %v1669, %v1668
    %v1685 = vpack.c.bf16 %v1671, %v1670
    %v1686 = vpack.c.bf16 %v1673, %v1672
    %v1687 = vpack.c.bf16 %v1675, %v1674
    %v1688 = vpack.c.bf16 %v1677, %v1676
    %v1689 = vpack.c.bf16 %v1679, %v1678
    %v1690 = vpack.c.bf16 %v1681, %v1680
    %v1691 = vpack.c.bf16 %v1683, %v1682
    %v1692 = vlaneseq
    %v1693 = vshrl.u32 %v1692, 7
    %v1694 = vsub.s32 7, %v1693
    %v1695 = vrot.slane %v962, %v1694
    %1696 = vmatprep.subr.bf16.mxu0 0
    %1697 = vmatpush1.bf16.msra.mxu0 %v1691
    %1698 = vmatprep.subr.bf16.mxu0 0
    %1699 = vmatpush1.bf16.msra.mxu0 %v1690
    %1700 = vmatprep.subr.bf16.mxu0 0
    %1701 = vmatpush1.bf16.msra.mxu0 %v1689
    %1702 = vmatprep.subr.bf16.mxu0 0
    %1703 = vmatpush1.bf16.msra.mxu0 %v1688
    %1704 = vmatprep.subr.bf16.mxu0 0
    %1705 = vmatpush1.bf16.msra.mxu0 %v1687
    %1706 = vmatprep.subr.bf16.mxu0 0
    %1707 = vmatpush1.bf16.msra.mxu0 %v1686
    %1708 = vmatprep.subr.bf16.mxu0 0
    %1709 = vmatpush1.bf16.msra.mxu0 %v1685
    %1710 = vmatprep.subr.bf16.mxu0 0
    %1711 = vmatpush1.bf16.msra.mxu0 %v1684
    %1712 = vmatprep.subr.bf16.mxu0 0
    %1713 = vmatpush2.bf16.msra.mxu0 0
    %1714 = vmatprep.subr.bf16.mxu0 0
    %1715 = vmatpush2.bf16.msra.mxu0 0
    %1716 = vmatprep.subr.bf16.mxu0 0
    %1717 = vmatpush2.bf16.msra.mxu0 0
    %1718 = vmatprep.subr.bf16.mxu0 0
    %1719 = vmatpush2.bf16.msra.mxu0 0
    %1720 = vmatprep.subr.bf16.mxu0 0
    %1721 = vmatpush2.bf16.msra.mxu0 0
    %1722 = vmatprep.subr.bf16.mxu0 0
    %1723 = vmatpush2.bf16.msra.mxu0 0
    %1724 = vmatprep.subr.bf16.mxu0 0
    %1725 = vmatpush2.bf16.msra.mxu0 0
    %1726 = vmatprep.subr.bf16.mxu0 0
    %1727 = vmatpush2.bf16.msra.mxu0 0
    %1728 = vmatprep.mubr.bf16.mxu0 0
    %1729 = vmatmul.mubr.bf16.gmra.mxu0 %v1666
    %v1730 = vpop.f32.mrf.mxu0
    %v1731 = vadd.f32 %v1695, %v1730
    %v1732 = vpop.f32.mrf.mxu0
    %v1733 = vpop.f32.mrf.mxu0
    %v1734 = vadd.f32 %v1695, %v1733
    %v1735 = vpop.f32.mrf.mxu0
    %1736 = vdwg.mxu0
    %v1737 = vadd.f32 %v1606, %v1731
    %v1738 = vadd.f32 %v1607, %v1734
    %v1739 = vsel %vm163, %v1737, 0.0
    %1740 = vadd.xlane.f32.xlu0 %v1739
    %v1741 = vpop.xlane.xlu0 %1740
    %v1742 = vsel %vm163, %v1738, 0.0
    %1743 = vadd.xlane.f32.xlu0 %v1742
    %v1744 = vpop.xlane.xlu0 %1743
    %v1745 = vmul.f32 %v1741, %v761
    %v1746 = vmul.f32 %v1744, %v761
    %v1747 = vsub.f32 %v1737, %v1745
    %v1748 = vsub.f32 %v1738, %v1746
    %v1749 = vmul.f32 %v1747, %v1747
    %v1750 = vmul.f32 %v1748, %v1748
    %v1751 = vsel %vm163, %v1749, 0.0
    %1752 = vadd.xlane.f32.xlu0 %v1751
    %v1753 = vpop.xlane.xlu0 %1752
    %v1754 = vsel %vm163, %v1750, 0.0
    %1755 = vadd.xlane.f32.xlu0 %v1754
    %v1756 = vpop.xlane.xlu0 %1755
    %v1757 = vmul.f32 %v1753, %v761
    %v1758 = vmul.f32 %v1756, %v761
    %v1759 = vadd.f32 %v1757, 1e-05
    %v1760 = vadd.f32 %v1758, 1e-05
    %v1761 = vrsqrt.pop %v1759
    %v1762 = vrsqrt.pop %v1760
    %v1763 = vmul.f32 %v1747, %v1761
    %v1764 = vmul.f32 %v1748, %v1762
    %v1765 = vlaneseq
    %v1766 = vshrl.u32 %v1765, 7
    %v1767 = vsub.s32 4, %v1766
    %v1768 = vrot.slane %v962, %v1767
    %v1769 = vmul.f32 %v1763, %v1768
    %v1770 = vmul.f32 %v1764, %v1768
    %v1771 = vlaneseq
    %v1772 = vshrl.u32 %v1771, 7
    %v1773 = vsub.s32 5, %v1772
    %v1774 = vrot.slane %v962, %v1773
    %v1775 = vadd.f32 %v1769, %v1774
    %v1776 = vadd.f32 %v1770, %v1774
    %s1777 = scalar_lea.vmem %s2, 16
    %v1778 = vld [vmem:[%s1777] sm:$0xff]
    %v1779 = vpack.c.bf16 %v1776, %v1775
    %v1780 = vld [vmem:[%s7] sm:$0xff]
    %v1781 = vld [vmem:[%s7 + $0x8] sm:$0xff]
    %v1782 = vld [vmem:[%s7 + $0x10] sm:$0xff]
    %v1783 = vld [vmem:[%s7 + $0x18] sm:$0xff]
    %v1784 = vpack.c.bf16 %v1781, %v1780
    %v1785 = vpack.c.bf16 %v1783, %v1782
    %v1786 = vlaneseq
    %v1787 = vshrl.u32 %v1786, 7
    %v1788 = vsub.s32 0, %v1787
    %v1789 = vrot.slane %v1778, %v1788
    %v1791 = vsel %vm163, %v1779, 0
    %1793 = vmatprep.subr.bf16.mxu0 0
    %1794 = vmatpush1.bf16.msra.mxu0 0
    %1795 = vmatprep.subr.bf16.mxu0 0
    %1796 = vmatpush1.bf16.msra.mxu0 0
    %1797 = vmatprep.subr.bf16.mxu0 0
    %1798 = vmatpush1.bf16.msra.mxu0 0
    %1799 = vmatprep.subr.bf16.mxu0 0
    %1800 = vmatpush1.bf16.msra.mxu0 0
    %1801 = vmatprep.subr.bf16.mxu0 0
    %1802 = vmatpush1.bf16.msra.mxu0 0
    %1803 = vmatprep.subr.bf16.mxu0 0
    %1804 = vmatpush1.bf16.msra.mxu0 0
    %1805 = vmatprep.subr.bf16.mxu0 0
    %1806 = vmatpush1.bf16.msra.mxu0 %v1785
    %1807 = vmatprep.subr.bf16.mxu0 0
    %1808 = vmatpush1.bf16.msra.mxu0 %v1784
    %1809 = vmatprep.subr.bf16.mxu0 0
    %1810 = vmatpush2.bf16.msra.mxu0 0
    %1811 = vmatprep.subr.bf16.mxu0 0
    %1812 = vmatpush2.bf16.msra.mxu0 0
    %1813 = vmatprep.subr.bf16.mxu0 0
    %1814 = vmatpush2.bf16.msra.mxu0 0
    %1815 = vmatprep.subr.bf16.mxu0 0
    %1816 = vmatpush2.bf16.msra.mxu0 0
    %1817 = vmatprep.subr.bf16.mxu0 0
    %1818 = vmatpush2.bf16.msra.mxu0 0
    %1819 = vmatprep.subr.bf16.mxu0 0
    %1820 = vmatpush2.bf16.msra.mxu0 0
    %1821 = vmatprep.subr.bf16.mxu0 0
    %1822 = vmatpush2.bf16.msra.mxu0 0
    %1823 = vmatprep.subr.bf16.mxu0 0
    %1824 = vmatpush2.bf16.msra.mxu0 0
    %1825 = vmatprep.mubr.bf16.mxu0 0
    %1826 = vmatmul.mubr.bf16.gmra.mxu0 %v1791
    %v1827 = vpop.f32.mrf.mxu0
    %v1828 = vadd.f32 %v1789, %v1827
    %v1829 = vpop.f32.mrf.mxu0
    %v1830 = vpop.f32.mrf.mxu0
    %v1831 = vadd.f32 %v1789, %v1830
    %v1832 = vpop.f32.mrf.mxu0
    %1833 = vdwg.mxu0
    %v1836 = vrot.slane %v1831, 7
    %vm1837 = vcmask 1041409
    %v1838 = vsel %vm1837, %v1836, %v1828
    %1840 = vst [vmem:[#allocation2] sm:$0x3] %v1838
    %vm1841 = vcmask 1042434
    %v1842 = vsel %vm1841, %v1836, %v1828
    %s1844 = scalar_lea.vmem [#allocation2], 2
    %1845 = vst [vmem:[%s1844 - $0x1] sm:$0x6] %v1842
    %vm1846 = vcmask 1043459
    %v1847 = vsel %vm1846, %v1836, %v1828
    %s1849 = scalar_lea.vmem [#allocation2], 4
    %1850 = vst [vmem:[%s1849 - $0x2] sm:$0xc] %v1847
    %vm1851 = vcmask 1044484
    %v1852 = vsel %vm1851, %v1836, %v1828
    %s1854 = scalar_lea.vmem [#allocation2], 6
    %1855 = vst [vmem:[%s1854 - $0x3] sm:$0x18] %v1852
    %vm1856 = vcmask 1045509
    %v1857 = vsel %vm1856, %v1836, %v1828
    %s1859 = scalar_lea.vmem [#allocation2], 8
    %1860 = vst [vmem:[%s1859 - $0x4] sm:$0x30] %v1857
    %vm1861 = vcmask 1046534
    %v1862 = vsel %vm1861, %v1836, %v1828
    %s1864 = scalar_lea.vmem [#allocation2], 10
    %1865 = vst [vmem:[%s1864 - $0x5] sm:$0x60] %v1862
    %vm1866 = vcmask 1047559
    %v1867 = vsel %vm1866, %v1836, %v1828
    %s1869 = scalar_lea.vmem [#allocation2], 12
    %1870 = vst [vmem:[%s1869 - $0x6] sm:$0xc0] %v1867
    %s1873 = scalar_lea.vmem [#allocation2], 14
    %1874 = vst [vmem:[%s1873 - $0x7] sm:$0x80] %v1828
    %1875 = vst [vmem:[%s1873 + $0x1] sm:$0x1] %v1836
    // Predicated region
    $region34: #{_forward_impl.1} parent=1 // pred_check
      _
    $region35: #{_forward_impl.1} parent=1 // pred_check_branch
      %1877 = sbr.rel (0) target = $region37
    $region36: #{_forward_impl.1} parent=1 // pred_region
      %s1879 = ssub.s32 256, 256
      %1880 = vsyncadd [#allocation3], %s1879
      %s1881 = sshll.u32 [#allocation2], 4
      %s1882 = int_to_ptr.vmem [resolvable:$true] %s1881
      %1887 = dma.vmem_to_hbm [thread:$0]  %s1882, 256, %s8, [#allocation3], 32, 32, 2
    $region37: #{_forward_impl.1} parent=1 // pred_fallthru
      _
    // Predicated region
    $region38: #{_forward_impl.1} parent=1 // pred_check
      _
    $region39: #{_forward_impl.1} parent=1 // pred_check_branch
      %1889 = sbr.rel (0) target = $region41
    $region40: #{_forward_impl.1} parent=1 // pred_region
      %1890 = dma.done [#allocation3], 256
    $region41: #{_forward_impl.1} parent=1 // pred_fallthru
      _
    %1891 = vsyncpa [#allocation3], 1

</llo_original>
